<compile_context>
chip_gen: v6e
topology: v6e:2x2x1
jax: 0.10.0
libtpu: 0.0.40
codegen_flags: <defaults>
</compile_context>

<pallas_src>
import math

import jax
import jax.numpy as jnp
from jax.experimental import pallas as pl
from jax.experimental.pallas import tpu as pltpu

EPS = 1e-5       # nn.BatchNorm1d default eps
OUT_PAD = 128    # lane-dense output width; real outputs live in columns 0..2


# ----------------------------------------------------------------------------
# Kernel
# ----------------------------------------------------------------------------
def _bn_scale_shift(z, gb, *, relu):
    """Training-mode BatchNorm1d folded into per-feature scale/shift.

    z : (B, dim) float32 pre-activation.
    gb: (2, dim) float32, row 0 = gamma, row 1 = beta.

    E[z] and E[z^2] are computed in a single cross-sublane reduction pass.
    """
    gamma = gb[0:1, :]
    beta = gb[1:2, :]
    stats = jnp.mean(jnp.stack([z, z * z], axis=0), axis=1)   # (2, dim)
    mean = stats[0:1, :]
    var = jnp.maximum(stats[1:2, :] - mean * mean, 0.0)
    scale = gamma * jax.lax.rsqrt(var + EPS)     # rsqrt -> EUP slot (free-ish)
    shift = beta - mean * scale
    y = z * scale + shift
    return jnp.maximum(y, 0.0) if relu else y


def _mm(a, w):
    # MXU matmul with f32 accumulation; activations cast to the (typically
    # bf16) weight dtype, everything else stays f32.
    return jnp.dot(a.astype(w.dtype), w, preferred_element_type=jnp.float32)


def _make_kernel(num_resnet_blocks, resnet_dim):
    R = resnet_dim

    def kernel(x_ref, w1_ref, w2_ref, wres_ref, wh1_ref, wh2_ref, wout_ref,
               bout_ref, bn1_ref, bnr_ref, bnh_ref, out_ref):
        # trunk: fc1 -> bn1 -> relu -> fc2 -> bn2 -> relu
        h = _mm(x_ref[...], w1_ref[...])                       # (B, h1)
        h = _bn_scale_shift(h, bn1_ref[...], relu=True)
        h = _mm(h, w2_ref[...])                                # (B, R)
        h = _bn_scale_shift(h, bnr_ref[0], relu=True)

        # residual blocks (static python loop -> static slab indices)
        for blk in range(num_resnet_blocks):
            res = h
            t = _mm(h, wres_ref[2 * blk])
            t = _bn_scale_shift(t, bnr_ref[1 + 2 * blk], relu=True)
            t = _mm(t, wres_ref[2 * blk + 1])
            t = _bn_scale_shift(t, bnr_ref[2 + 2 * blk], relu=False)
            h = jnp.maximum(t + res, 0.0)

        # three heads, fused along the feature axis where it is free:
        #   head layer 1:  (B,R) @ (R,3R)       -> BN -> relu
        #   head layer 2:  three (R,R) matmuls  -> BN       (no block-diag zeros)
        #   output:        (B,3R) @ (3R,OUT_PAD) + bias     (lane-dense store)
        t = _mm(h, wh1_ref[...])                               # (B, 3R)
        t = _bn_scale_shift(t, bnh_ref[0], relu=True)
        t = jnp.concatenate(
            [_mm(t[:, hd * R:(hd + 1) * R], wh2_ref[hd]) for hd in range(3)],
            axis=1)                                            # (B, 3R)
        t = _bn_scale_shift(t, bnh_ref[1], relu=False)
        out_ref[...] = _mm(t, wout_ref[...]) + bout_ref[...]   # (B, OUT_PAD)

    return kernel


# ----------------------------------------------------------------------------
# Parameter init (PyTorch-faithful per-layer layout) + slab packing
# ----------------------------------------------------------------------------
def init_raw_params(key, state_dim, one_hot_depth, h1_dim, resnet_dim,
                    num_resnet_blocks):
    """Per-layer params mimicking PyTorch defaults: Linear ~ U(+-1/sqrt(fan_in)),
    BN gamma=1, beta=0.  Weights stored as (fan_in, fan_out)."""
    def linear(k, fan_in, fan_out):
        k1, k2 = jax.random.split(k)
        bound = 1.0 / math.sqrt(fan_in)
        w = jax.random.uniform(k1, (fan_in, fan_out), jnp.float32, -bound, bound)
        b = jax.random.uniform(k2, (fan_out,), jnp.float32, -bound, bound)
        return w, b

    def bn(dim):
        return jnp.ones((dim,), jnp.float32), jnp.zeros((dim,), jnp.float32)

    n_keys = 2 + 2 * num_resnet_blocks + 9
    keys = iter(jax.random.split(key, n_keys))
    in_dim = state_dim * one_hot_depth if one_hot_depth > 0 else state_dim

    raw = {
        "fc1": linear(next(keys), in_dim, h1_dim), "bn1": bn(h1_dim),
        "fc2": linear(next(keys), h1_dim, resnet_dim), "bn2": bn(resnet_dim),
        "blocks": [], "heads": [],
    }
    for _ in range(num_resnet_blocks):
        raw["blocks"].append(
            (linear(next(keys), resnet_dim, resnet_dim), bn(resnet_dim),
             linear(next(keys), resnet_dim, resnet_dim), bn(resnet_dim)))
    for _ in range(3):
        raw["heads"].append(
            (linear(next(keys), resnet_dim, resnet_dim), bn(resnet_dim),
             linear(next(keys), resnet_dim, resnet_dim), bn(resnet_dim),
             linear(next(keys), resnet_dim, 1)))
    return raw


def pack_params(raw, *, resnet_dim, num_resnet_blocks,
                matmul_dtype=jnp.bfloat16):
    """Pack per-layer params into the slab layout the kernel expects.

    Linear biases feeding a BatchNorm are dropped (BN mean-subtraction cancels
    them exactly). BN params stay f32; matmul weights are cast to bf16 by
    default (f32 available for strict numerical checking).
    """
    R = resnet_dim
    md = matmul_dtype
    heads = raw["heads"]

    w1 = raw["fc1"][0].astype(md)
    w2 = raw["fc2"][0].astype(md)

    if num_resnet_blocks > 0:
        wres = jnp.stack([w for blk in raw["blocks"]
                          for w in (blk[0][0], blk[2][0])]).astype(md)
    else:
        wres = jnp.zeros((1, R, R), jnp.float32).astype(md)   # dummy, unused

    wh1 = jnp.concatenate([h[0][0] for h in heads], axis=1).astype(md)   # (R, 3R)
    wh2 = jnp.stack([h[2][0] for h in heads]).astype(md)                 # (3, R, R)

    wout = jax.scipy.linalg.block_diag(*[h[4][0] for h in heads])        # (3R, 3)
    wout = jnp.pad(wout, ((0, 0), (0, OUT_PAD - 3))).astype(md)          # (3R, 128)
    bout = jnp.concatenate([h[4][1] for h in heads])                     # (3,)
    bout = jnp.pad(bout, (0, OUT_PAD - 3)).reshape(1, OUT_PAD).astype(jnp.float32)

    bn1 = jnp.stack(raw["bn1"])                                          # (2, h1)
    bnr_list = [jnp.stack(raw["bn2"])]
    for blk in raw["blocks"]:
        bnr_list.append(jnp.stack(blk[1]))
        bnr_list.append(jnp.stack(blk[3]))
    bnr = jnp.stack(bnr_list)                                            # (1+2nb, 2, R)
    bnh = jnp.stack([
        jnp.stack([jnp.concatenate([h[1][0] for h in heads]),
                   jnp.concatenate([h[1][1] for h in heads])]),
        jnp.stack([jnp.concatenate([h[3][0] for h in heads]),
                   jnp.concatenate([h[3][1] for h in heads])]),
    ])                                                                   # (2, 2, 3R)

    return [w1, w2, wres, wh1, wh2, wout, bout, bn1, bnr, bnh]


# ----------------------------------------------------------------------------
# Wrapper
# ----------------------------------------------------------------------------
def _vmem_capacity_bytes():
    """Generation-aware VMEM capacity (v5e/v6e: 128 MiB, v7x: 64 MiB/TC)."""
    try:
        cap = int(pltpu.get_tpu_info().vmem_capacity_bytes)
        if cap > 0:
            return cap
    except Exception:
        pass
    return 64 * 2**20   # conservative fallback (v7x per-TensorCore)


def resnet_model4_2_forward(states, packed, *, state_dim, one_hot_depth,
                            resnet_dim, num_resnet_blocks,
                            matmul_dtype=jnp.bfloat16):
    B = states.shape[0]
    # F.one_hot(x.long(), depth).float().view(-1, state_dim*one_hot_depth)
    # TODO(synk): for large one_hot_depth, replace this dense one-hot (and the
    # fc1 matmul) with a gather-and-sum of W1 rows driven by scalar prefetch.
    if one_hot_depth > 0:
        x = jax.nn.one_hot(states, one_hot_depth, dtype=matmul_dtype)
        x = x.reshape(B, state_dim * one_hot_depth)
    else:
        x = states.astype(matmul_dtype)

    inputs = [x] + list(packed)
    kernel = _make_kernel(num_resnet_blocks, resnet_dim)

    param_bytes = sum(int(a.size) * a.dtype.itemsize for a in inputs)
    vmem_cap = _vmem_capacity_bytes()
    vmem_limit = int(min(0.85 * vmem_cap,
                         max(16 * 2**20, 2 * param_bytes + 4 * 2**20)))

    # TODO(synk): add a "parallel" batch grid axis + two-pass global-stat BN
    # and stream HBM-resident weight slabs (pl.ANY + emit_pipeline) for
    # production-sized dims; at toy scale everything fits in VMEM in one shot.
    out = pl.pallas_call(
        kernel,
        out_shape=jax.ShapeDtypeStruct((B, OUT_PAD), jnp.float32),
        in_specs=[pl.BlockSpec(memory_space=pltpu.MemorySpace.VMEM)] * len(inputs),
        out_specs=pl.BlockSpec(memory_space=pltpu.MemorySpace.VMEM),
        compiler_params=pltpu.CompilerParams(vmem_limit_bytes=vmem_limit),
    )(*inputs)

    # torch.stack((l1,l2,l3)).squeeze().T == (B, 3) for B > 1.
    # TODO(synk): for B == 1 PyTorch returns shape (3,); caller must squeeze.
    return out[:, :3]


# ----------------------------------------------------------------------------
# Faithful pure-JAX reference (unfused, with biases) for correctness checking
# ----------------------------------------------------------------------------
def reference_forward(states, raw, *, state_dim, one_hot_depth,
                      num_resnet_blocks):
    B = states.shape[0]
    if one_hot_depth > 0:
        x = jax.nn.one_hot(states, one_hot_depth, dtype=jnp.float32)
        x = x.reshape(B, state_dim * one_hot_depth)
    else:
        x = states.astype(jnp.float32)

    def lin(v, wb):
        return v @ wb[0] + wb[1]

    def bn(v, gb):
        mean = jnp.mean(v, axis=0, keepdims=True)
        var = jnp.mean(jnp.square(v - mean), axis=0, keepdims=True)
        return (v - mean) / jnp.sqrt(var + EPS) * gb[0] + gb[1]

    x = jax.nn.relu(bn(lin(x, raw["fc1"]), raw["bn1"]))
    x = jax.nn.relu(bn(lin(x, raw["fc2"]), raw["bn2"]))
    for blk in raw["blocks"]:
        res = x
        h = jax.nn.relu(bn(lin(x, blk[0]), blk[1]))
        h = bn(lin(h, blk[2]), blk[3])
        x = jax.nn.relu(h + res)
    outs = []
    for hd in raw["heads"]:
        h = jax.nn.relu(bn(lin(x, hd[0]), hd[1]))
        h = bn(lin(h, hd[2]), hd[3])
        outs.append(lin(h, hd[4]))            # (B, 1)
    return jnp.concatenate(outs, axis=1)      # (B, 3)


# ----------------------------------------------------------------------------
if __name__ == "__main__":
    batch = 8                 # multiple of 8 (f32 sublane)
    state_dim = 8
    one_hot_depth = 4
    h1_dim = 32
    resnet_dim = 32
    num_resnet_blocks = 2

    key = jax.random.PRNGKey(0)
    k_states, k_params = jax.random.split(key)

    states = jax.random.randint(k_states, (batch, state_dim), 0, one_hot_depth,
                                dtype=jnp.int32)
    raw = init_raw_params(k_params, state_dim, one_hot_depth, h1_dim,
                          resnet_dim, num_resnet_blocks)

    # f32 matmul path: strict check against the faithful (unfused) reference.
    packed_f32 = pack_params(raw, resnet_dim=resnet_dim,
                             num_resnet_blocks=num_resnet_blocks,
                             matmul_dtype=jnp.float32)
    out = resnet_model4_2_forward(
        states, packed_f32, state_dim=state_dim, one_hot_depth=one_hot_depth,
        resnet_dim=resnet_dim, num_resnet_blocks=num_resnet_blocks,
        matmul_dtype=jnp.float32)
    out = jax.block_until_ready(out)

    ref = jax.block_until_ready(reference_forward(
        states, raw, state_dim=state_dim, one_hot_depth=one_hot_depth,
        num_resnet_blocks=num_resnet_blocks))

    assert out.shape == (batch, 3), out.shape
    assert jnp.allclose(out, ref, rtol=1e-4, atol=1e-4), (out, ref)

    # Default bf16 matmul path (MXU-native on v5e/v6e/v7x): loose check + finiteness.
    packed_bf16 = pack_params(raw, resnet_dim=resnet_dim,
                              num_resnet_blocks=num_resnet_blocks)
    out_bf16 = jax.block_until_ready(resnet_model4_2_forward(
        states, packed_bf16, state_dim=state_dim, one_hot_depth=one_hot_depth,
        resnet_dim=resnet_dim, num_resnet_blocks=num_resnet_blocks))
    assert out_bf16.shape == (batch, 3)
    assert bool(jnp.all(jnp.isfinite(out_bf16)))
    assert bool(jnp.allclose(out_bf16, ref, rtol=5e-2, atol=5e-2))

    print("KERNEL_OK")
</pallas_src>

<mosaic_0001>
module attributes {stable_mosaic.version = 11 : i64} {
  func.func @kernel(%arg0: memref<8x32xf32, #tpu.memory_space<vmem>>, %arg1: memref<32x32xf32, #tpu.memory_space<vmem>>, %arg2: memref<32x32xf32, #tpu.memory_space<vmem>>, %arg3: memref<4x32x32xf32, #tpu.memory_space<vmem>>, %arg4: memref<32x96xf32, #tpu.memory_space<vmem>>, %arg5: memref<3x32x32xf32, #tpu.memory_space<vmem>>, %arg6: memref<96x128xf32, #tpu.memory_space<vmem>>, %arg7: memref<1x128xf32, #tpu.memory_space<vmem>>, %arg8: memref<2x32xf32, #tpu.memory_space<vmem>>, %arg9: memref<5x2x32xf32, #tpu.memory_space<vmem>>, %arg10: memref<2x2x96xf32, #tpu.memory_space<vmem>>, %arg11: memref<8x128xf32, #tpu.memory_space<vmem>>) attributes {dimension_semantics = [], scalar_prefetch = 0 : i64, scratch_operands = 0 : i64, tpu.core_type = #tpu.core_type<tc>} {
    %c0 = arith.constant 0 : index
    %c0_0 = arith.constant 0 : index
    %0 = vector.load %arg0[%c0, %c0_0] : memref<8x32xf32, #tpu.memory_space<vmem>>, vector<8x32xf32>
    %c0_1 = arith.constant 0 : index
    %c0_2 = arith.constant 0 : index
    %1 = vector.load %arg1[%c0_1, %c0_2] : memref<32x32xf32, #tpu.memory_space<vmem>>, vector<32x32xf32>
    %cst = arith.constant dense<0.000000e+00> : vector<8x32xf32>
    %2 = tpu.matmul %0, %1, %cst {dimension_numbers = #tpu.dot_dimension_numbers<[1], [0], [0], [1], [0, 0, 1, 1], [], []>} : vector<8x32xf32>, vector<32x32xf32>, vector<8x32xf32> -> vector<8x32xf32>
    %c0_3 = arith.constant 0 : index
    %c0_4 = arith.constant 0 : index
    %3 = vector.load %arg8[%c0_3, %c0_4] : memref<2x32xf32, #tpu.memory_space<vmem>>, vector<2x32xf32>
    %4 = vector.extract_strided_slice %3 {offsets = [0, 0], sizes = [1, 32], strides = [1, 1]} : vector<2x32xf32> to vector<1x32xf32>
    %5 = vector.extract_strided_slice %3 {offsets = [1, 0], sizes = [1, 32], strides = [1, 1]} : vector<2x32xf32> to vector<1x32xf32>
    %6 = arith.mulf %2, %2 : vector<8x32xf32>
    %7 = vector.shape_cast %2 : vector<8x32xf32> to vector<1x8x32xf32>
    %8 = vector.shape_cast %6 : vector<8x32xf32> to vector<1x8x32xf32>
    %9 = tpu.concatenate %7, %8 in 0 : vector<1x8x32xf32>, vector<1x8x32xf32> -> vector<2x8x32xf32>
    %cst_5 = arith.constant dense<0.000000e+00> : vector<2x32xf32>
    %10 = vector.multi_reduction <add>, %9, %cst_5 [1] : vector<2x8x32xf32> to vector<2x32xf32>
    %cst_6 = arith.constant 8.000000e+00 : f32
    %11 = vector.broadcast %cst_6 : f32 to vector<2x32xf32>
    %12 = arith.divf %10, %11 : vector<2x32xf32>
    %13 = vector.extract_strided_slice %12 {offsets = [0, 0], sizes = [1, 32], strides = [1, 1]} : vector<2x32xf32> to vector<1x32xf32>
    %14 = vector.extract_strided_slice %12 {offsets = [1, 0], sizes = [1, 32], strides = [1, 1]} : vector<2x32xf32> to vector<1x32xf32>
    %15 = arith.mulf %13, %13 : vector<1x32xf32>
    %16 = arith.subf %14, %15 : vector<1x32xf32>
    %cst_7 = arith.constant 0.000000e+00 : f32
    %17 = vector.broadcast %cst_7 : f32 to vector<1x32xf32>
    %18 = arith.maximumf %16, %17 : vector<1x32xf32>
    %cst_8 = arith.constant 9.99999974E-6 : f32
    %19 = vector.broadcast %cst_8 : f32 to vector<1x32xf32>
    %20 = arith.addf %18, %19 : vector<1x32xf32>
    %21 = math.rsqrt %20 : vector<1x32xf32>
    %22 = arith.mulf %4, %21 : vector<1x32xf32>
    %23 = arith.mulf %13, %22 : vector<1x32xf32>
    %24 = arith.subf %5, %23 : vector<1x32xf32>
    %25 = vector.broadcast %22 : vector<1x32xf32> to vector<8x32xf32>
    %26 = arith.mulf %2, %25 : vector<8x32xf32>
    %27 = vector.broadcast %24 : vector<1x32xf32> to vector<8x32xf32>
    %28 = arith.addf %26, %27 : vector<8x32xf32>
    %cst_9 = arith.constant 0.000000e+00 : f32
    %29 = vector.broadcast %cst_9 : f32 to vector<8x32xf32>
    %30 = arith.maximumf %28, %29 : vector<8x32xf32>
    %c0_10 = arith.constant 0 : index
    %c0_11 = arith.constant 0 : index
    %31 = vector.load %arg2[%c0_10, %c0_11] : memref<32x32xf32, #tpu.memory_space<vmem>>, vector<32x32xf32>
    %cst_12 = arith.constant dense<0.000000e+00> : vector<8x32xf32>
    %32 = tpu.matmul %30, %31, %cst_12 {dimension_numbers = #tpu.dot_dimension_numbers<[1], [0], [0], [1], [0, 0, 1, 1], [], []>} : vector<8x32xf32>, vector<32x32xf32>, vector<8x32xf32> -> vector<8x32xf32>
    %c0_13 = arith.constant 0 : index
    %c0_14 = arith.constant 0 : index
    %c0_15 = arith.constant 0 : index
    %33 = vector.load %arg9[%c0_13, %c0_14, %c0_15] : memref<5x2x32xf32, #tpu.memory_space<vmem>>, vector<1x2x32xf32>
    %34 = vector.shape_cast %33 : vector<1x2x32xf32> to vector<2x32xf32>
    %35 = vector.extract_strided_slice %34 {offsets = [0, 0], sizes = [1, 32], strides = [1, 1]} : vector<2x32xf32> to vector<1x32xf32>
    %36 = vector.extract_strided_slice %34 {offsets = [1, 0], sizes = [1, 32], strides = [1, 1]} : vector<2x32xf32> to vector<1x32xf32>
    %37 = arith.mulf %32, %32 : vector<8x32xf32>
    %38 = vector.shape_cast %32 : vector<8x32xf32> to vector<1x8x32xf32>
    %39 = vector.shape_cast %37 : vector<8x32xf32> to vector<1x8x32xf32>
    %40 = tpu.concatenate %38, %39 in 0 : vector<1x8x32xf32>, vector<1x8x32xf32> -> vector<2x8x32xf32>
    %cst_16 = arith.constant dense<0.000000e+00> : vector<2x32xf32>
    %41 = vector.multi_reduction <add>, %40, %cst_16 [1] : vector<2x8x32xf32> to vector<2x32xf32>
    %cst_17 = arith.constant 8.000000e+00 : f32
    %42 = vector.broadcast %cst_17 : f32 to vector<2x32xf32>
    %43 = arith.divf %41, %42 : vector<2x32xf32>
    %44 = vector.extract_strided_slice %43 {offsets = [0, 0], sizes = [1, 32], strides = [1, 1]} : vector<2x32xf32> to vector<1x32xf32>
    %45 = vector.extract_strided_slice %43 {offsets = [1, 0], sizes = [1, 32], strides = [1, 1]} : vector<2x32xf32> to vector<1x32xf32>
    %46 = arith.mulf %44, %44 : vector<1x32xf32>
    %47 = arith.subf %45, %46 : vector<1x32xf32>
    %cst_18 = arith.constant 0.000000e+00 : f32
    %48 = vector.broadcast %cst_18 : f32 to vector<1x32xf32>
    %49 = arith.maximumf %47, %48 : vector<1x32xf32>
    %cst_19 = arith.constant 9.99999974E-6 : f32
    %50 = vector.broadcast %cst_19 : f32 to vector<1x32xf32>
    %51 = arith.addf %49, %50 : vector<1x32xf32>
    %52 = math.rsqrt %51 : vector<1x32xf32>
    %53 = arith.mulf %35, %52 : vector<1x32xf32>
    %54 = arith.mulf %44, %53 : vector<1x32xf32>
    %55 = arith.subf %36, %54 : vector<1x32xf32>
    %56 = vector.broadcast %53 : vector<1x32xf32> to vector<8x32xf32>
    %57 = arith.mulf %32, %56 : vector<8x32xf32>
    %58 = vector.broadcast %55 : vector<1x32xf32> to vector<8x32xf32>
    %59 = arith.addf %57, %58 : vector<8x32xf32>
    %cst_20 = arith.constant 0.000000e+00 : f32
    %60 = vector.broadcast %cst_20 : f32 to vector<8x32xf32>
    %61 = arith.maximumf %59, %60 : vector<8x32xf32>
    %c0_21 = arith.constant 0 : index
    %c0_22 = arith.constant 0 : index
    %c0_23 = arith.constant 0 : index
    %62 = vector.load %arg3[%c0_21, %c0_22, %c0_23] : memref<4x32x32xf32, #tpu.memory_space<vmem>>, vector<1x32x32xf32>
    %63 = vector.shape_cast %62 : vector<1x32x32xf32> to vector<32x32xf32>
    %cst_24 = arith.constant dense<0.000000e+00> : vector<8x32xf32>
    %64 = tpu.matmul %61, %63, %cst_24 {dimension_numbers = #tpu.dot_dimension_numbers<[1], [0], [0], [1], [0, 0, 1, 1], [], []>} : vector<8x32xf32>, vector<32x32xf32>, vector<8x32xf32> -> vector<8x32xf32>
    %c1 = arith.constant 1 : index
    %c0_25 = arith.constant 0 : index
    %c0_26 = arith.constant 0 : index
    %65 = vector.load %arg9[%c1, %c0_25, %c0_26] : memref<5x2x32xf32, #tpu.memory_space<vmem>>, vector<1x2x32xf32>
    %66 = vector.shape_cast %65 : vector<1x2x32xf32> to vector<2x32xf32>
    %67 = vector.extract_strided_slice %66 {offsets = [0, 0], sizes = [1, 32], strides = [1, 1]} : vector<2x32xf32> to vector<1x32xf32>
    %68 = vector.extract_strided_slice %66 {offsets = [1, 0], sizes = [1, 32], strides = [1, 1]} : vector<2x32xf32> to vector<1x32xf32>
    %69 = arith.mulf %64, %64 : vector<8x32xf32>
    %70 = vector.shape_cast %64 : vector<8x32xf32> to vector<1x8x32xf32>
    %71 = vector.shape_cast %69 : vector<8x32xf32> to vector<1x8x32xf32>
    %72 = tpu.concatenate %70, %71 in 0 : vector<1x8x32xf32>, vector<1x8x32xf32> -> vector<2x8x32xf32>
    %cst_27 = arith.constant dense<0.000000e+00> : vector<2x32xf32>
    %73 = vector.multi_reduction <add>, %72, %cst_27 [1] : vector<2x8x32xf32> to vector<2x32xf32>
    %cst_28 = arith.constant 8.000000e+00 : f32
    %74 = vector.broadcast %cst_28 : f32 to vector<2x32xf32>
    %75 = arith.divf %73, %74 : vector<2x32xf32>
    %76 = vector.extract_strided_slice %75 {offsets = [0, 0], sizes = [1, 32], strides = [1, 1]} : vector<2x32xf32> to vector<1x32xf32>
    %77 = vector.extract_strided_slice %75 {offsets = [1, 0], sizes = [1, 32], strides = [1, 1]} : vector<2x32xf32> to vector<1x32xf32>
    %78 = arith.mulf %76, %76 : vector<1x32xf32>
    %79 = arith.subf %77, %78 : vector<1x32xf32>
    %cst_29 = arith.constant 0.000000e+00 : f32
    %80 = vector.broadcast %cst_29 : f32 to vector<1x32xf32>
    %81 = arith.maximumf %79, %80 : vector<1x32xf32>
    %cst_30 = arith.constant 9.99999974E-6 : f32
    %82 = vector.broadcast %cst_30 : f32 to vector<1x32xf32>
    %83 = arith.addf %81, %82 : vector<1x32xf32>
    %84 = math.rsqrt %83 : vector<1x32xf32>
    %85 = arith.mulf %67, %84 : vector<1x32xf32>
    %86 = arith.mulf %76, %85 : vector<1x32xf32>
    %87 = arith.subf %68, %86 : vector<1x32xf32>
    %88 = vector.broadcast %85 : vector<1x32xf32> to vector<8x32xf32>
    %89 = arith.mulf %64, %88 : vector<8x32xf32>
    %90 = vector.broadcast %87 : vector<1x32xf32> to vector<8x32xf32>
    %91 = arith.addf %89, %90 : vector<8x32xf32>
    %cst_31 = arith.constant 0.000000e+00 : f32
    %92 = vector.broadcast %cst_31 : f32 to vector<8x32xf32>
    %93 = arith.maximumf %91, %92 : vector<8x32xf32>
    %c1_32 = arith.constant 1 : index
    %c0_33 = arith.constant 0 : index
    %c0_34 = arith.constant 0 : index
    %94 = vector.load %arg3[%c1_32, %c0_33, %c0_34] : memref<4x32x32xf32, #tpu.memory_space<vmem>>, vector<1x32x32xf32>
    %95 = vector.shape_cast %94 : vector<1x32x32xf32> to vector<32x32xf32>
    %cst_35 = arith.constant dense<0.000000e+00> : vector<8x32xf32>
    %96 = tpu.matmul %93, %95, %cst_35 {dimension_numbers = #tpu.dot_dimension_numbers<[1], [0], [0], [1], [0, 0, 1, 1], [], []>} : vector<8x32xf32>, vector<32x32xf32>, vector<8x32xf32> -> vector<8x32xf32>
    %c2 = arith.constant 2 : index
    %c0_36 = arith.constant 0 : index
    %c0_37 = arith.constant 0 : index
    %97 = vector.load %arg9[%c2, %c0_36, %c0_37] : memref<5x2x32xf32, #tpu.memory_space<vmem>>, vector<1x2x32xf32>
    %98 = vector.shape_cast %97 : vector<1x2x32xf32> to vector<2x32xf32>
    %99 = vector.extract_strided_slice %98 {offsets = [0, 0], sizes = [1, 32], strides = [1, 1]} : vector<2x32xf32> to vector<1x32xf32>
    %100 = vector.extract_strided_slice %98 {offsets = [1, 0], sizes = [1, 32], strides = [1, 1]} : vector<2x32xf32> to vector<1x32xf32>
    %101 = arith.mulf %96, %96 : vector<8x32xf32>
    %102 = vector.shape_cast %96 : vector<8x32xf32> to vector<1x8x32xf32>
    %103 = vector.shape_cast %101 : vector<8x32xf32> to vector<1x8x32xf32>
    %104 = tpu.concatenate %102, %103 in 0 : vector<1x8x32xf32>, vector<1x8x32xf32> -> vector<2x8x32xf32>
    %cst_38 = arith.constant dense<0.000000e+00> : vector<2x32xf32>
    %105 = vector.multi_reduction <add>, %104, %cst_38 [1] : vector<2x8x32xf32> to vector<2x32xf32>
    %cst_39 = arith.constant 8.000000e+00 : f32
    %106 = vector.broadcast %cst_39 : f32 to vector<2x32xf32>
    %107 = arith.divf %105, %106 : vector<2x32xf32>
    %108 = vector.extract_strided_slice %107 {offsets = [0, 0], sizes = [1, 32], strides = [1, 1]} : vector<2x32xf32> to vector<1x32xf32>
    %109 = vector.extract_strided_slice %107 {offsets = [1, 0], sizes = [1, 32], strides = [1, 1]} : vector<2x32xf32> to vector<1x32xf32>
    %110 = arith.mulf %108, %108 : vector<1x32xf32>
    %111 = arith.subf %109, %110 : vector<1x32xf32>
    %cst_40 = arith.constant 0.000000e+00 : f32
    %112 = vector.broadcast %cst_40 : f32 to vector<1x32xf32>
    %113 = arith.maximumf %111, %112 : vector<1x32xf32>
    %cst_41 = arith.constant 9.99999974E-6 : f32
    %114 = vector.broadcast %cst_41 : f32 to vector<1x32xf32>
    %115 = arith.addf %113, %114 : vector<1x32xf32>
    %116 = math.rsqrt %115 : vector<1x32xf32>
    %117 = arith.mulf %99, %116 : vector<1x32xf32>
    %118 = arith.mulf %108, %117 : vector<1x32xf32>
    %119 = arith.subf %100, %118 : vector<1x32xf32>
    %120 = vector.broadcast %117 : vector<1x32xf32> to vector<8x32xf32>
    %121 = arith.mulf %96, %120 : vector<8x32xf32>
    %122 = vector.broadcast %119 : vector<1x32xf32> to vector<8x32xf32>
    %123 = arith.addf %121, %122 : vector<8x32xf32>
    %124 = arith.addf %123, %61 : vector<8x32xf32>
    %cst_42 = arith.constant 0.000000e+00 : f32
    %125 = vector.broadcast %cst_42 : f32 to vector<8x32xf32>
    %126 = arith.maximumf %124, %125 : vector<8x32xf32>
    %c2_43 = arith.constant 2 : index
    %c0_44 = arith.constant 0 : index
    %c0_45 = arith.constant 0 : index
    %127 = vector.load %arg3[%c2_43, %c0_44, %c0_45] : memref<4x32x32xf32, #tpu.memory_space<vmem>>, vector<1x32x32xf32>
    %128 = vector.shape_cast %127 : vector<1x32x32xf32> to vector<32x32xf32>
    %cst_46 = arith.constant dense<0.000000e+00> : vector<8x32xf32>
    %129 = tpu.matmul %126, %128, %cst_46 {dimension_numbers = #tpu.dot_dimension_numbers<[1], [0], [0], [1], [0, 0, 1, 1], [], []>} : vector<8x32xf32>, vector<32x32xf32>, vector<8x32xf32> -> vector<8x32xf32>
    %c3 = arith.constant 3 : index
    %c0_47 = arith.constant 0 : index
    %c0_48 = arith.constant 0 : index
    %130 = vector.load %arg9[%c3, %c0_47, %c0_48] : memref<5x2x32xf32, #tpu.memory_space<vmem>>, vector<1x2x32xf32>
    %131 = vector.shape_cast %130 : vector<1x2x32xf32> to vector<2x32xf32>
    %132 = vector.extract_strided_slice %131 {offsets = [0, 0], sizes = [1, 32], strides = [1, 1]} : vector<2x32xf32> to vector<1x32xf32>
    %133 = vector.extract_strided_slice %131 {offsets = [1, 0], sizes = [1, 32], strides = [1, 1]} : vector<2x32xf32> to vector<1x32xf32>
    %134 = arith.mulf %129, %129 : vector<8x32xf32>
    %135 = vector.shape_cast %129 : vector<8x32xf32> to vector<1x8x32xf32>
    %136 = vector.shape_cast %134 : vector<8x32xf32> to vector<1x8x32xf32>
    %137 = tpu.concatenate %135, %136 in 0 : vector<1x8x32xf32>, vector<1x8x32xf32> -> vector<2x8x32xf32>
    %cst_49 = arith.constant dense<0.000000e+00> : vector<2x32xf32>
    %138 = vector.multi_reduction <add>, %137, %cst_49 [1] : vector<2x8x32xf32> to vector<2x32xf32>
    %cst_50 = arith.constant 8.000000e+00 : f32
    %139 = vector.broadcast %cst_50 : f32 to vector<2x32xf32>
    %140 = arith.divf %138, %139 : vector<2x32xf32>
    %141 = vector.extract_strided_slice %140 {offsets = [0, 0], sizes = [1, 32], strides = [1, 1]} : vector<2x32xf32> to vector<1x32xf32>
    %142 = vector.extract_strided_slice %140 {offsets = [1, 0], sizes = [1, 32], strides = [1, 1]} : vector<2x32xf32> to vector<1x32xf32>
    %143 = arith.mulf %141, %141 : vector<1x32xf32>
    %144 = arith.subf %142, %143 : vector<1x32xf32>
    %cst_51 = arith.constant 0.000000e+00 : f32
    %145 = vector.broadcast %cst_51 : f32 to vector<1x32xf32>
    %146 = arith.maximumf %144, %145 : vector<1x32xf32>
    %cst_52 = arith.constant 9.99999974E-6 : f32
    %147 = vector.broadcast %cst_52 : f32 to vector<1x32xf32>
    %148 = arith.addf %146, %147 : vector<1x32xf32>
    %149 = math.rsqrt %148 : vector<1x32xf32>
    %150 = arith.mulf %132, %149 : vector<1x32xf32>
    %151 = arith.mulf %141, %150 : vector<1x32xf32>
    %152 = arith.subf %133, %151 : vector<1x32xf32>
    %153 = vector.broadcast %150 : vector<1x32xf32> to vector<8x32xf32>
    %154 = arith.mulf %129, %153 : vector<8x32xf32>
    %155 = vector.broadcast %152 : vector<1x32xf32> to vector<8x32xf32>
    %156 = arith.addf %154, %155 : vector<8x32xf32>
    %cst_53 = arith.constant 0.000000e+00 : f32
    %157 = vector.broadcast %cst_53 : f32 to vector<8x32xf32>
    %158 = arith.maximumf %156, %157 : vector<8x32xf32>
    %c3_54 = arith.constant 3 : index
    %c0_55 = arith.constant 0 : index
    %c0_56 = arith.constant 0 : index
    %159 = vector.load %arg3[%c3_54, %c0_55, %c0_56] : memref<4x32x32xf32, #tpu.memory_space<vmem>>, vector<1x32x32xf32>
    %160 = vector.shape_cast %159 : vector<1x32x32xf32> to vector<32x32xf32>
    %cst_57 = arith.constant dense<0.000000e+00> : vector<8x32xf32>
    %161 = tpu.matmul %158, %160, %cst_57 {dimension_numbers = #tpu.dot_dimension_numbers<[1], [0], [0], [1], [0, 0, 1, 1], [], []>} : vector<8x32xf32>, vector<32x32xf32>, vector<8x32xf32> -> vector<8x32xf32>
    %c4 = arith.constant 4 : index
    %c0_58 = arith.constant 0 : index
    %c0_59 = arith.constant 0 : index
    %162 = vector.load %arg9[%c4, %c0_58, %c0_59] : memref<5x2x32xf32, #tpu.memory_space<vmem>>, vector<1x2x32xf32>
    %163 = vector.shape_cast %162 : vector<1x2x32xf32> to vector<2x32xf32>
    %164 = vector.extract_strided_slice %163 {offsets = [0, 0], sizes = [1, 32], strides = [1, 1]} : vector<2x32xf32> to vector<1x32xf32>
    %165 = vector.extract_strided_slice %163 {offsets = [1, 0], sizes = [1, 32], strides = [1, 1]} : vector<2x32xf32> to vector<1x32xf32>
    %166 = arith.mulf %161, %161 : vector<8x32xf32>
    %167 = vector.shape_cast %161 : vector<8x32xf32> to vector<1x8x32xf32>
    %168 = vector.shape_cast %166 : vector<8x32xf32> to vector<1x8x32xf32>
    %169 = tpu.concatenate %167, %168 in 0 : vector<1x8x32xf32>, vector<1x8x32xf32> -> vector<2x8x32xf32>
    %cst_60 = arith.constant dense<0.000000e+00> : vector<2x32xf32>
    %170 = vector.multi_reduction <add>, %169, %cst_60 [1] : vector<2x8x32xf32> to vector<2x32xf32>
    %cst_61 = arith.constant 8.000000e+00 : f32
    %171 = vector.broadcast %cst_61 : f32 to vector<2x32xf32>
    %172 = arith.divf %170, %171 : vector<2x32xf32>
    %173 = vector.extract_strided_slice %172 {offsets = [0, 0], sizes = [1, 32], strides = [1, 1]} : vector<2x32xf32> to vector<1x32xf32>
    %174 = vector.extract_strided_slice %172 {offsets = [1, 0], sizes = [1, 32], strides = [1, 1]} : vector<2x32xf32> to vector<1x32xf32>
    %175 = arith.mulf %173, %173 : vector<1x32xf32>
    %176 = arith.subf %174, %175 : vector<1x32xf32>
    %cst_62 = arith.constant 0.000000e+00 : f32
    %177 = vector.broadcast %cst_62 : f32 to vector<1x32xf32>
    %178 = arith.maximumf %176, %177 : vector<1x32xf32>
    %cst_63 = arith.constant 9.99999974E-6 : f32
    %179 = vector.broadcast %cst_63 : f32 to vector<1x32xf32>
    %180 = arith.addf %178, %179 : vector<1x32xf32>
    %181 = math.rsqrt %180 : vector<1x32xf32>
    %182 = arith.mulf %164, %181 : vector<1x32xf32>
    %183 = arith.mulf %173, %182 : vector<1x32xf32>
    %184 = arith.subf %165, %183 : vector<1x32xf32>
    %185 = vector.broadcast %182 : vector<1x32xf32> to vector<8x32xf32>
    %186 = arith.mulf %161, %185 : vector<8x32xf32>
    %187 = vector.broadcast %184 : vector<1x32xf32> to vector<8x32xf32>
    %188 = arith.addf %186, %187 : vector<8x32xf32>
    %189 = arith.addf %188, %126 : vector<8x32xf32>
    %cst_64 = arith.constant 0.000000e+00 : f32
    %190 = vector.broadcast %cst_64 : f32 to vector<8x32xf32>
    %191 = arith.maximumf %189, %190 : vector<8x32xf32>
    %c0_65 = arith.constant 0 : index
    %c0_66 = arith.constant 0 : index
    %192 = vector.load %arg4[%c0_65, %c0_66] : memref<32x96xf32, #tpu.memory_space<vmem>>, vector<32x96xf32>
    %cst_67 = arith.constant dense<0.000000e+00> : vector<8x96xf32>
    %193 = tpu.matmul %191, %192, %cst_67 {dimension_numbers = #tpu.dot_dimension_numbers<[1], [0], [0], [1], [0, 0, 1, 1], [], []>} : vector<8x32xf32>, vector<32x96xf32>, vector<8x96xf32> -> vector<8x96xf32>
    %c0_68 = arith.constant 0 : index
    %c0_69 = arith.constant 0 : index
    %c0_70 = arith.constant 0 : index
    %194 = vector.load %arg10[%c0_68, %c0_69, %c0_70] : memref<2x2x96xf32, #tpu.memory_space<vmem>>, vector<1x2x96xf32>
    %195 = vector.shape_cast %194 : vector<1x2x96xf32> to vector<2x96xf32>
    %196 = vector.extract_strided_slice %195 {offsets = [0, 0], sizes = [1, 96], strides = [1, 1]} : vector<2x96xf32> to vector<1x96xf32>
    %197 = vector.extract_strided_slice %195 {offsets = [1, 0], sizes = [1, 96], strides = [1, 1]} : vector<2x96xf32> to vector<1x96xf32>
    %198 = arith.mulf %193, %193 : vector<8x96xf32>
    %199 = vector.shape_cast %193 : vector<8x96xf32> to vector<1x8x96xf32>
    %200 = vector.shape_cast %198 : vector<8x96xf32> to vector<1x8x96xf32>
    %201 = tpu.concatenate %199, %200 in 0 : vector<1x8x96xf32>, vector<1x8x96xf32> -> vector<2x8x96xf32>
    %cst_71 = arith.constant dense<0.000000e+00> : vector<2x96xf32>
    %202 = vector.multi_reduction <add>, %201, %cst_71 [1] : vector<2x8x96xf32> to vector<2x96xf32>
    %cst_72 = arith.constant 8.000000e+00 : f32
    %203 = vector.broadcast %cst_72 : f32 to vector<2x96xf32>
    %204 = arith.divf %202, %203 : vector<2x96xf32>
    %205 = vector.extract_strided_slice %204 {offsets = [0, 0], sizes = [1, 96], strides = [1, 1]} : vector<2x96xf32> to vector<1x96xf32>
    %206 = vector.extract_strided_slice %204 {offsets = [1, 0], sizes = [1, 96], strides = [1, 1]} : vector<2x96xf32> to vector<1x96xf32>
    %207 = arith.mulf %205, %205 : vector<1x96xf32>
    %208 = arith.subf %206, %207 : vector<1x96xf32>
    %cst_73 = arith.constant 0.000000e+00 : f32
    %209 = vector.broadcast %cst_73 : f32 to vector<1x96xf32>
    %210 = arith.maximumf %208, %209 : vector<1x96xf32>
    %cst_74 = arith.constant 9.99999974E-6 : f32
    %211 = vector.broadcast %cst_74 : f32 to vector<1x96xf32>
    %212 = arith.addf %210, %211 : vector<1x96xf32>
    %213 = math.rsqrt %212 : vector<1x96xf32>
    %214 = arith.mulf %196, %213 : vector<1x96xf32>
    %215 = arith.mulf %205, %214 : vector<1x96xf32>
    %216 = arith.subf %197, %215 : vector<1x96xf32>
    %217 = vector.broadcast %214 : vector<1x96xf32> to vector<8x96xf32>
    %218 = arith.mulf %193, %217 : vector<8x96xf32>
    %219 = vector.broadcast %216 : vector<1x96xf32> to vector<8x96xf32>
    %220 = arith.addf %218, %219 : vector<8x96xf32>
    %cst_75 = arith.constant 0.000000e+00 : f32
    %221 = vector.broadcast %cst_75 : f32 to vector<8x96xf32>
    %222 = arith.maximumf %220, %221 : vector<8x96xf32>
    %223 = vector.extract_strided_slice %222 {offsets = [0, 0], sizes = [8, 32], strides = [1, 1]} : vector<8x96xf32> to vector<8x32xf32>
    %c0_76 = arith.constant 0 : index
    %c0_77 = arith.constant 0 : index
    %c0_78 = arith.constant 0 : index
    %224 = vector.load %arg5[%c0_76, %c0_77, %c0_78] : memref<3x32x32xf32, #tpu.memory_space<vmem>>, vector<1x32x32xf32>
    %225 = vector.shape_cast %224 : vector<1x32x32xf32> to vector<32x32xf32>
    %cst_79 = arith.constant dense<0.000000e+00> : vector<8x32xf32>
    %226 = tpu.matmul %223, %225, %cst_79 {dimension_numbers = #tpu.dot_dimension_numbers<[1], [0], [0], [1], [0, 0, 1, 1], [], []>} : vector<8x32xf32>, vector<32x32xf32>, vector<8x32xf32> -> vector<8x32xf32>
    %227 = vector.extract_strided_slice %222 {offsets = [0, 32], sizes = [8, 32], strides = [1, 1]} : vector<8x96xf32> to vector<8x32xf32>
    %c1_80 = arith.constant 1 : index
    %c0_81 = arith.constant 0 : index
    %c0_82 = arith.constant 0 : index
    %228 = vector.load %arg5[%c1_80, %c0_81, %c0_82] : memref<3x32x32xf32, #tpu.memory_space<vmem>>, vector<1x32x32xf32>
    %229 = vector.shape_cast %228 : vector<1x32x32xf32> to vector<32x32xf32>
    %cst_83 = arith.constant dense<0.000000e+00> : vector<8x32xf32>
    %230 = tpu.matmul %227, %229, %cst_83 {dimension_numbers = #tpu.dot_dimension_numbers<[1], [0], [0], [1], [0, 0, 1, 1], [], []>} : vector<8x32xf32>, vector<32x32xf32>, vector<8x32xf32> -> vector<8x32xf32>
    %231 = vector.extract_strided_slice %222 {offsets = [0, 64], sizes = [8, 32], strides = [1, 1]} : vector<8x96xf32> to vector<8x32xf32>
    %c2_84 = arith.constant 2 : index
    %c0_85 = arith.constant 0 : index
    %c0_86 = arith.constant 0 : index
    %232 = vector.load %arg5[%c2_84, %c0_85, %c0_86] : memref<3x32x32xf32, #tpu.memory_space<vmem>>, vector<1x32x32xf32>
    %233 = vector.shape_cast %232 : vector<1x32x32xf32> to vector<32x32xf32>
    %cst_87 = arith.constant dense<0.000000e+00> : vector<8x32xf32>
    %234 = tpu.matmul %231, %233, %cst_87 {dimension_numbers = #tpu.dot_dimension_numbers<[1], [0], [0], [1], [0, 0, 1, 1], [], []>} : vector<8x32xf32>, vector<32x32xf32>, vector<8x32xf32> -> vector<8x32xf32>
    %235 = tpu.concatenate %226, %230, %234 in 1 : vector<8x32xf32>, vector<8x32xf32>, vector<8x32xf32> -> vector<8x96xf32>
    %c1_88 = arith.constant 1 : index
    %c0_89 = arith.constant 0 : index
    %c0_90 = arith.constant 0 : index
    %236 = vector.load %arg10[%c1_88, %c0_89, %c0_90] : memref<2x2x96xf32, #tpu.memory_space<vmem>>, vector<1x2x96xf32>
    %237 = vector.shape_cast %236 : vector<1x2x96xf32> to vector<2x96xf32>
    %238 = vector.extract_strided_slice %237 {offsets = [0, 0], sizes = [1, 96], strides = [1, 1]} : vector<2x96xf32> to vector<1x96xf32>
    %239 = vector.extract_strided_slice %237 {offsets = [1, 0], sizes = [1, 96], strides = [1, 1]} : vector<2x96xf32> to vector<1x96xf32>
    %240 = arith.mulf %235, %235 : vector<8x96xf32>
    %241 = vector.shape_cast %235 : vector<8x96xf32> to vector<1x8x96xf32>
    %242 = vector.shape_cast %240 : vector<8x96xf32> to vector<1x8x96xf32>
    %243 = tpu.concatenate %241, %242 in 0 : vector<1x8x96xf32>, vector<1x8x96xf32> -> vector<2x8x96xf32>
    %cst_91 = arith.constant dense<0.000000e+00> : vector<2x96xf32>
    %244 = vector.multi_reduction <add>, %243, %cst_91 [1] : vector<2x8x96xf32> to vector<2x96xf32>
    %cst_92 = arith.constant 8.000000e+00 : f32
    %245 = vector.broadcast %cst_92 : f32 to vector<2x96xf32>
    %246 = arith.divf %244, %245 : vector<2x96xf32>
    %247 = vector.extract_strided_slice %246 {offsets = [0, 0], sizes = [1, 96], strides = [1, 1]} : vector<2x96xf32> to vector<1x96xf32>
    %248 = vector.extract_strided_slice %246 {offsets = [1, 0], sizes = [1, 96], strides = [1, 1]} : vector<2x96xf32> to vector<1x96xf32>
    %249 = arith.mulf %247, %247 : vector<1x96xf32>
    %250 = arith.subf %248, %249 : vector<1x96xf32>
    %cst_93 = arith.constant 0.000000e+00 : f32
    %251 = vector.broadcast %cst_93 : f32 to vector<1x96xf32>
    %252 = arith.maximumf %250, %251 : vector<1x96xf32>
    %cst_94 = arith.constant 9.99999974E-6 : f32
    %253 = vector.broadcast %cst_94 : f32 to vector<1x96xf32>
    %254 = arith.addf %252, %253 : vector<1x96xf32>
    %255 = math.rsqrt %254 : vector<1x96xf32>
    %256 = arith.mulf %238, %255 : vector<1x96xf32>
    %257 = arith.mulf %247, %256 : vector<1x96xf32>
    %258 = arith.subf %239, %257 : vector<1x96xf32>
    %259 = vector.broadcast %256 : vector<1x96xf32> to vector<8x96xf32>
    %260 = arith.mulf %235, %259 : vector<8x96xf32>
    %261 = vector.broadcast %258 : vector<1x96xf32> to vector<8x96xf32>
    %262 = arith.addf %260, %261 : vector<8x96xf32>
    %c0_95 = arith.constant 0 : index
    %c0_96 = arith.constant 0 : index
    %263 = vector.load %arg6[%c0_95, %c0_96] : memref<96x128xf32, #tpu.memory_space<vmem>>, vector<96x128xf32>
    %cst_97 = arith.constant dense<0.000000e+00> : vector<8x128xf32>
    %264 = tpu.matmul %262, %263, %cst_97 {dimension_numbers = #tpu.dot_dimension_numbers<[1], [0], [0], [1], [0, 0, 1, 1], [], []>} : vector<8x96xf32>, vector<96x128xf32>, vector<8x128xf32> -> vector<8x128xf32>
    %c0_98 = arith.constant 0 : index
    %c0_99 = arith.constant 0 : index
    %265 = vector.load %arg7[%c0_98, %c0_99] : memref<1x128xf32, #tpu.memory_space<vmem>>, vector<1x128xf32>
    %266 = vector.broadcast %265 : vector<1x128xf32> to vector<8x128xf32>
    %267 = arith.addf %264, %266 : vector<8x128xf32>
    %c0_100 = arith.constant 0 : index
    %c0_101 = arith.constant 0 : index
    %268 = vector.load %arg11[%c0_100, %c0_101] : memref<8x128xf32, #tpu.memory_space<vmem>>, vector<8x128xf32>
    tpu.vector_store %arg11[%c0_100, %c0_101], %267 {strides = array<i32>} : memref<8x128xf32, #tpu.memory_space<vmem>>, vector<8x128xf32>,
    return
  }
}

</mosaic_0001>

<llo_original>
// kernel: tpu_custom_call.1
$region0: #{tpu_custom_call.1}
  #allocation0 [shape = 'u32[]', space=smem, size = 0x4, offset = 0x4, fixed_abs, tag = 'smem constant byte address 0x4 - core index']
  #allocation1 [shape = 'u32[144,128]{1,0:T(1,128)}', space=vmem, size = 0x12000, scoped, tag = 'internal scratch']
  %s0 = inlined_call_operand.hbm [shape: f32[8,32], index: 0, kind: input, shape index: {}]
  %s1 = inlined_call_operand.hbm [shape: f32[32,32], index: 1, kind: input, shape index: {}]
  %s2 = inlined_call_operand.hbm [shape: f32[32,32], index: 2, kind: input, shape index: {}]
  %s3 = inlined_call_operand.hbm [shape: f32[4,32,32], index: 3, kind: input, shape index: {}]
  %s4 = inlined_call_operand.hbm [shape: f32[32,96], index: 4, kind: input, shape index: {}]
  %s5 = inlined_call_operand.hbm [shape: f32[3,32,32], index: 5, kind: input, shape index: {}]
  %s6 = inlined_call_operand.hbm [shape: f32[96,128], index: 6, kind: input, shape index: {}]
  %s7 = inlined_call_operand.hbm [shape: f32[1,128], index: 7, kind: input, shape index: {}]
  %s8 = inlined_call_operand.vmem [shape: f32[2,32], index: 8, kind: input, shape index: {}]
  %s9 = inlined_call_operand.vmem [shape: f32[5,2,32], index: 9, kind: input, shape index: {}]
  %s10 = inlined_call_operand.vmem [shape: f32[2,2,96], index: 10, kind: input, shape index: {}]
  %s11 = inlined_call_operand.hbm [shape: f32[8,128], index: 11, kind: output, shape index: {}]
  %s12 = sld [smem:[#allocation0]]
  $region86: #{tpu_custom_call.1} parent=0
    _
  %s14 = ssub.s32 1, %s12
  %s15 = scalar_select 0, %s14, %s12
  $region1: #{tpu_custom_call.1} parent=0
    #allocation2 [shape = 'u8[4096]{0}', space=vmem, size = 0x1000, scoped, tag = 'input window, operand 0, single buffered']
    #allocation3 [shape = 's32[1]{0}', space=sflag, size = 0x4, scoped, tag = 'scoped memory for tpu_custom_call.1']
    #allocation4 [shape = 's32[1]{0}', space=sflag, size = 0x4, scoped, tag = 'scoped memory for tpu_custom_call.1']
    #allocation5 [shape = 'u8[16384]{0}', space=vmem, size = 0x4000, scoped, tag = 'input window, operand 1, single buffered']
    #allocation6 [shape = 's32[1]{0}', space=sflag, size = 0x4, scoped, tag = 'scoped memory for tpu_custom_call.1']
    #allocation7 [shape = 'u8[16384]{0}', space=vmem, size = 0x4000, scoped, tag = 'input window, operand 2, single buffered']
    #allocation8 [shape = 'u8[65536]{0}', space=vmem, size = 0x10000, scoped, tag = 'input window, operand 3, single buffered']
    #allocation9 [shape = 's32[1]{0}', space=sflag, size = 0x4, scoped, tag = 'scoped memory for tpu_custom_call.1']
    #allocation10 [shape = 'u8[16384]{0}', space=vmem, size = 0x4000, scoped, tag = 'input window, operand 4, single buffered']
    #allocation11 [shape = 'u8[49152]{0}', space=vmem, size = 0xc000, scoped, tag = 'input window, operand 5, single buffered']
    #allocation12 [shape = 's32[1]{0}', space=sflag, size = 0x4, scoped, tag = 'scoped memory for tpu_custom_call.1']
    #allocation13 [shape = 'u8[49152]{0}', space=vmem, size = 0xc000, scoped, tag = 'input window, operand 6, single buffered']
    #allocation14 [shape = 'u8[512]{0}', space=vmem, size = 0x400, scoped, tag = 'input window, operand 7, single buffered']
    #allocation15 [shape = 's32[1]{0}', space=sflag, size = 0x4, scoped, tag = 'scoped memory for tpu_custom_call.1']
    #allocation16 [shape = 'u8[4096]{0}', space=vmem, size = 0x1000, scoped, tag = 'output window, operand 0, single buffered']
    %16 = vsyncpa [#allocation3], 0
    %17 = vsyncpa [#allocation6], 0
    %18 = vsyncpa [#allocation9], 0
    %19 = vsyncpa [#allocation12], 0
    %20 = vsyncpa [#allocation15], 0
    %21 = vsyncpa [#allocation4], 0
    // Predicated region
    $region2: #{tpu_custom_call.1} parent=1 // pred_check
      _
    $region3: #{tpu_custom_call.1} parent=1 // pred_check_branch
      %23 = sbr.rel (0) target = $region5
    $region4: #{tpu_custom_call.1} parent=1 // pred_region
      %s25 = ssub.s32 128, 128
      %26 = vsyncadd [#allocation3], %s25
      %s28 = sshll.u32 [#allocation2], 4
      %s29 = int_to_ptr.vmem [resolvable:$true] %s28
      %31 = dma.hbm_to_vmem [thread:$0]  %s0, 128, %s29, [#allocation3]
    $region5: #{tpu_custom_call.1} parent=1 // pred_fallthru
      _
    // Predicated region
    $region6: #{tpu_custom_call.1} parent=1 // pred_check
      _
    $region7: #{tpu_custom_call.1} parent=1 // pred_check_branch
      %33 = sbr.rel (0) target = $region9
    $region8: #{tpu_custom_call.1} parent=1 // pred_region
      %s35 = ssub.s32 512, 512
      %36 = vsyncadd [#allocation6], %s35
      %s37 = sshll.u32 [#allocation5], 4
      %s38 = int_to_ptr.vmem [resolvable:$true] %s37
      %43 = dma.hbm_to_vmem [thread:$0]  %s1, 512, %s38, [#allocation6], 128, 128, 8
    $region9: #{tpu_custom_call.1} parent=1 // pred_fallthru
      _
    // Predicated region
    $region10: #{tpu_custom_call.1} parent=1 // pred_check
      _
    $region11: #{tpu_custom_call.1} parent=1 // pred_check_branch
      %45 = sbr.rel (0) target = $region13
    $region12: #{tpu_custom_call.1} parent=1 // pred_region
      %s47 = ssub.s32 512, 512
      %48 = vsyncadd [#allocation6], %s47
      %s49 = sshll.u32 [#allocation7], 4
      %s50 = int_to_ptr.vmem [resolvable:$true] %s49
      %55 = dma.hbm_to_vmem [thread:$0]  %s2, 512, %s50, [#allocation6], 128, 128, 8
    $region13: #{tpu_custom_call.1} parent=1 // pred_fallthru
      _
    // Predicated region
    $region14: #{tpu_custom_call.1} parent=1 // pred_check
      _
    $region15: #{tpu_custom_call.1} parent=1 // pred_check_branch
      %57 = sbr.rel (0) target = $region17
    $region16: #{tpu_custom_call.1} parent=1 // pred_region
      %s59 = ssub.s32 2048, 2048
      %60 = vsyncadd [#allocation9], %s59
      %s61 = sshll.u32 [#allocation8], 4
      %s62 = int_to_ptr.vmem [resolvable:$true] %s61
      %67 = dma.hbm_to_vmem [thread:$0]  %s3, 2048, %s62, [#allocation9], 128, 128, 8
    $region17: #{tpu_custom_call.1} parent=1 // pred_fallthru
      _
    // Predicated region
    $region18: #{tpu_custom_call.1} parent=1 // pred_check
      _
    $region19: #{tpu_custom_call.1} parent=1 // pred_check_branch
      %69 = sbr.rel (0) target = $region21
    $region20: #{tpu_custom_call.1} parent=1 // pred_region
      %s71 = ssub.s32 512, 512
      %72 = vsyncadd [#allocation9], %s71
      %s73 = sshll.u32 [#allocation10], 4
      %s74 = int_to_ptr.vmem [resolvable:$true] %s73
      %79 = dma.hbm_to_vmem [thread:$0]  %s4, 512, %s74, [#allocation9], 128, 128, 8
    $region21: #{tpu_custom_call.1} parent=1 // pred_fallthru
      _
    // Predicated region
    $region22: #{tpu_custom_call.1} parent=1 // pred_check
      _
    $region23: #{tpu_custom_call.1} parent=1 // pred_check_branch
      %81 = sbr.rel (0) target = $region25
    $region24: #{tpu_custom_call.1} parent=1 // pred_region
      %s83 = ssub.s32 1536, 1536
      %84 = vsyncadd [#allocation12], %s83
      %s85 = sshll.u32 [#allocation11], 4
      %s86 = int_to_ptr.vmem [resolvable:$true] %s85
      %91 = dma.hbm_to_vmem [thread:$0]  %s5, 1536, %s86, [#allocation12], 128, 128, 8
    $region25: #{tpu_custom_call.1} parent=1 // pred_fallthru
      _
    // Predicated region
    $region26: #{tpu_custom_call.1} parent=1 // pred_check
      _
    $region27: #{tpu_custom_call.1} parent=1 // pred_check_branch
      %93 = sbr.rel (0) target = $region29
    $region28: #{tpu_custom_call.1} parent=1 // pred_region
      %s95 = ssub.s32 1536, 1536
      %96 = vsyncadd [#allocation12], %s95
      %s97 = sshll.u32 [#allocation13], 4
      %s98 = int_to_ptr.vmem [resolvable:$true] %s97
      %103 = dma.hbm_to_vmem [thread:$0]  %s6, 1536, %s98, [#allocation12], 128, 128, 8
    $region29: #{tpu_custom_call.1} parent=1 // pred_fallthru
      _
    // Predicated region
    $region30: #{tpu_custom_call.1} parent=1 // pred_check
      _
    $region31: #{tpu_custom_call.1} parent=1 // pred_check_branch
      %105 = sbr.rel (0) target = $region33
    $region32: #{tpu_custom_call.1} parent=1 // pred_region
      %s107 = ssub.s32 16, 16
      %108 = vsyncadd [#allocation15], %s107
      %s110 = sshll.u32 [#allocation14], 4
      %s111 = int_to_ptr.vmem [resolvable:$true] %s110
      %113 = dma.hbm_to_vmem [thread:$0]  %s7, 16, %s111, [#allocation15]
    $region33: #{tpu_custom_call.1} parent=1 // pred_fallthru
      _
    // Predicated region
    $region34: #{tpu_custom_call.1} parent=1 // pred_check
      _
    $region35: #{tpu_custom_call.1} parent=1 // pred_check_branch
      %115 = sbr.rel (0) target = $region37
    $region36: #{tpu_custom_call.1} parent=1 // pred_region
      _
    $region37: #{tpu_custom_call.1} parent=1 // pred_fallthru
      _
    // Predicated region
    $region38: #{tpu_custom_call.1} parent=1 // pred_check
      _
    $region39: #{tpu_custom_call.1} parent=1 // pred_check_branch
      %117 = sbr.rel (0) target = $region41
    $region40: #{tpu_custom_call.1} parent=1 // pred_region
      _
    $region41: #{tpu_custom_call.1} parent=1 // pred_fallthru
      _
    // Predicated region
    $region42: #{tpu_custom_call.1} parent=1 // pred_check
      _
    $region43: #{tpu_custom_call.1} parent=1 // pred_check_branch
      %119 = sbr.rel (0) target = $region45
    $region44: #{tpu_custom_call.1} parent=1 // pred_region
      _
    $region45: #{tpu_custom_call.1} parent=1 // pred_fallthru
      _
    // Predicated region
    $region46: #{tpu_custom_call.1} parent=1 // pred_check
      _
    $region47: #{tpu_custom_call.1} parent=1 // pred_check_branch
      %121 = sbr.rel (0) target = $region49
    $region48: #{tpu_custom_call.1} parent=1 // pred_region
      %122 = dma.done [#allocation3], 128
    $region49: #{tpu_custom_call.1} parent=1 // pred_fallthru
      _
    // Predicated region
    $region50: #{tpu_custom_call.1} parent=1 // pred_check
      _
    $region51: #{tpu_custom_call.1} parent=1 // pred_check_branch
      %124 = sbr.rel (0) target = $region53
    $region52: #{tpu_custom_call.1} parent=1 // pred_region
      %125 = dma.done [#allocation6], 512
    $region53: #{tpu_custom_call.1} parent=1 // pred_fallthru
      _
    // Predicated region
    $region54: #{tpu_custom_call.1} parent=1 // pred_check
      _
    $region55: #{tpu_custom_call.1} parent=1 // pred_check_branch
      %127 = sbr.rel (0) target = $region57
    $region56: #{tpu_custom_call.1} parent=1 // pred_region
      %128 = dma.done [#allocation6], 512
    $region57: #{tpu_custom_call.1} parent=1 // pred_fallthru
      _
    // Predicated region
    $region58: #{tpu_custom_call.1} parent=1 // pred_check
      _
    $region59: #{tpu_custom_call.1} parent=1 // pred_check_branch
      %130 = sbr.rel (0) target = $region61
    $region60: #{tpu_custom_call.1} parent=1 // pred_region
      %131 = dma.done [#allocation9], 2048
    $region61: #{tpu_custom_call.1} parent=1 // pred_fallthru
      _
    // Predicated region
    $region62: #{tpu_custom_call.1} parent=1 // pred_check
      _
    $region63: #{tpu_custom_call.1} parent=1 // pred_check_branch
      %133 = sbr.rel (0) target = $region65
    $region64: #{tpu_custom_call.1} parent=1 // pred_region
      %134 = dma.done [#allocation9], 512
    $region65: #{tpu_custom_call.1} parent=1 // pred_fallthru
      _
    // Predicated region
    $region66: #{tpu_custom_call.1} parent=1 // pred_check
      _
    $region67: #{tpu_custom_call.1} parent=1 // pred_check_branch
      %136 = sbr.rel (0) target = $region69
    $region68: #{tpu_custom_call.1} parent=1 // pred_region
      %137 = dma.done [#allocation12], 1536
    $region69: #{tpu_custom_call.1} parent=1 // pred_fallthru
      _
    // Predicated region
    $region70: #{tpu_custom_call.1} parent=1 // pred_check
      _
    $region71: #{tpu_custom_call.1} parent=1 // pred_check_branch
      %139 = sbr.rel (0) target = $region73
    $region72: #{tpu_custom_call.1} parent=1 // pred_region
      %140 = dma.done [#allocation12], 1536
    $region73: #{tpu_custom_call.1} parent=1 // pred_fallthru
      _
    // Predicated region
    $region74: #{tpu_custom_call.1} parent=1 // pred_check
      _
    $region75: #{tpu_custom_call.1} parent=1 // pred_check_branch
      %142 = sbr.rel (0) target = $region77
    $region76: #{tpu_custom_call.1} parent=1 // pred_region
      %143 = dma.done [#allocation15], 16
    $region77: #{tpu_custom_call.1} parent=1 // pred_fallthru
      _
    %v144 = vld [vmem:[#allocation2] sm:$0xff]
    %v145 = vld [vmem:[#allocation5] sm:$0xff]
    %v146 = vld [vmem:[#allocation5 + $0x8] sm:$0xff]
    %v147 = vld [vmem:[#allocation5 + $0x10] sm:$0xff]
    %v148 = vld [vmem:[#allocation5 + $0x18] sm:$0xff]
    %vm149 = vcmask 261120
    %v151 = vsel %vm149, %v144, 0
    %153 = vmatprep.subr.mxu0 0.0
    %154 = vmatpush1.msra.mxu0 0.0
    %155 = vmatprep.subr.mxu0 0.0
    %156 = vmatpush1.msra.mxu0 0.0
    %157 = vmatprep.subr.mxu0 0.0
    %158 = vmatpush1.msra.mxu0 0.0
    %159 = vmatprep.subr.mxu0 0.0
    %160 = vmatpush1.msra.mxu0 0.0
    %161 = vmatprep.subr.mxu0 0.0
    %162 = vmatpush1.msra.mxu0 0.0
    %163 = vmatprep.subr.mxu0 0.0
    %164 = vmatpush1.msra.mxu0 0.0
    %165 = vmatprep.subr.mxu0 0.0
    %166 = vmatpush1.msra.mxu0 0.0
    %167 = vmatprep.subr.mxu0 0.0
    %168 = vmatpush1.msra.mxu0 0.0
    %169 = vmatprep.subr.mxu0 0.0
    %170 = vmatpush1.msra.mxu0 0.0
    %171 = vmatprep.subr.mxu0 0.0
    %172 = vmatpush1.msra.mxu0 0.0
    %173 = vmatprep.subr.mxu0 0.0
    %174 = vmatpush1.msra.mxu0 0.0
    %175 = vmatprep.subr.mxu0 0.0
    %176 = vmatpush1.msra.mxu0 0.0
    %177 = vmatprep.subr.mxu0 0.0
    %178 = vmatpush1.msra.mxu0 %v148
    %179 = vmatprep.subr.mxu0 0.0
    %180 = vmatpush1.msra.mxu0 %v147
    %181 = vmatprep.subr.mxu0 0.0
    %182 = vmatpush1.msra.mxu0 %v146
    %183 = vmatprep.subr.mxu0 0.0
    %184 = vmatpush1.msra.mxu0 %v145
    %185 = vmatprep.subr.mxu0 0.0
    %186 = vmatpush2.msra.mxu0 0.0
    %187 = vmatprep.subr.mxu0 0.0
    %188 = vmatpush2.msra.mxu0 0.0
    %189 = vmatprep.subr.mxu0 0.0
    %190 = vmatpush2.msra.mxu0 0.0
    %191 = vmatprep.subr.mxu0 0.0
    %192 = vmatpush2.msra.mxu0 0.0
    %193 = vmatprep.subr.mxu0 0.0
    %194 = vmatpush2.msra.mxu0 0.0
    %195 = vmatprep.subr.mxu0 0.0
    %196 = vmatpush2.msra.mxu0 0.0
    %197 = vmatprep.subr.mxu0 0.0
    %198 = vmatpush2.msra.mxu0 0.0
    %199 = vmatprep.subr.mxu0 0.0
    %200 = vmatpush2.msra.mxu0 0.0
    %201 = vmatprep.subr.mxu0 0.0
    %202 = vmatpush2.msra.mxu0 0.0
    %203 = vmatprep.subr.mxu0 0.0
    %204 = vmatpush2.msra.mxu0 0.0
    %205 = vmatprep.subr.mxu0 0.0
    %206 = vmatpush2.msra.mxu0 0.0
    %207 = vmatprep.subr.mxu0 0.0
    %208 = vmatpush2.msra.mxu0 0.0
    %209 = vmatprep.subr.mxu0 0.0
    %210 = vmatpush2.msra.mxu0 0.0
    %211 = vmatprep.subr.mxu0 0.0
    %212 = vmatpush2.msra.mxu0 0.0
    %213 = vmatprep.subr.mxu0 0.0
    %214 = vmatpush2.msra.mxu0 0.0
    %215 = vmatprep.subr.mxu0 0.0
    %216 = vmatpush2.msra.mxu0 0.0
    %217 = vmatprep.mubr.f32.mxu0 0.0
    %218 = vmatmul.mubr.f32.gmra.mxu0 %v151
    %v219 = vpop.f32.mrf.mxu0
    %v220 = vadd.f32 0.0, %v219
    %v221 = vpop.f32.mrf.mxu0
    %222 = vdwg.mxu0
    %v223 = vld [vmem:[%s8] sm:$0x3]
    %v224 = vmul.f32 %v220, %v220
    %v225 = vsel %vm149, %v220, 0.0
    %v226 = vrot.slane %v225, 4
    %v227 = vadd.f32 %v225, %v226
    %v228 = vrot.slane %v227, 2
    %v229 = vadd.f32 %v227, %v228
    %v230 = vrot.slane %v229, 1
    %v231 = vadd.f32 %v229, %v230
    %v232 = vsel %vm149, %v224, 0.0
    %v233 = vrot.slane %v232, 4
    %v234 = vadd.f32 %v232, %v233
    %v235 = vrot.slane %v234, 2
    %v236 = vadd.f32 %v234, %v235
    %v237 = vrot.slane %v236, 1
    %v238 = vadd.f32 %v236, %v237
    %v239 = vrcp.pop 8.0
    %v240 = vmul.f32 %v231, %v239
    %v241 = vmul.f32 %v238, %v239
    %v242 = vmul.f32 %v240, %v240
    %v243 = vsub.f32 %v241, %v242
    %v244 = vmax.f32 %v243, 0.0
    %v245 = vadd.f32 %v244, 1e-05
    %v246 = vrsqrt.pop %v245
    %v247 = vmul.f32 %v223, %v246
    %v248 = vmul.f32 %v240, %v247
    %v250 = vrot.slane %v248, 7
    %v252 = vsub.f32 %v223, %v250
    %v253 = vlaneseq
    %v254 = vshrl.u32 %v253, 7
    %v255 = vsub.s32 0, %v254
    %v256 = vrot.slane %v247, %v255
    %v257 = vmul.f32 %v220, %v256
    %v258 = vlaneseq
    %v259 = vshrl.u32 %v258, 7
    %v260 = vsub.s32 1, %v259
    %v261 = vrot.slane %v252, %v260
    %v262 = vadd.f32 %v257, %v261
    %v263 = vmax.f32 %v262, 0.0
    %v264 = vld [vmem:[#allocation7] sm:$0xff]
    %v265 = vld [vmem:[#allocation7 + $0x8] sm:$0xff]
    %v266 = vld [vmem:[#allocation7 + $0x10] sm:$0xff]
    %v267 = vld [vmem:[#allocation7 + $0x18] sm:$0xff]
    %v269 = vsel %vm149, %v263, 0
    %271 = vmatprep.subr.mxu0 0.0
    %272 = vmatpush1.msra.mxu0 0.0
    %273 = vmatprep.subr.mxu0 0.0
    %274 = vmatpush1.msra.mxu0 0.0
    %275 = vmatprep.subr.mxu0 0.0
    %276 = vmatpush1.msra.mxu0 0.0
    %277 = vmatprep.subr.mxu0 0.0
    %278 = vmatpush1.msra.mxu0 0.0
    %279 = vmatprep.subr.mxu0 0.0
    %280 = vmatpush1.msra.mxu0 0.0
    %281 = vmatprep.subr.mxu0 0.0
    %282 = vmatpush1.msra.mxu0 0.0
    %283 = vmatprep.subr.mxu0 0.0
    %284 = vmatpush1.msra.mxu0 0.0
    %285 = vmatprep.subr.mxu0 0.0
    %286 = vmatpush1.msra.mxu0 0.0
    %287 = vmatprep.subr.mxu0 0.0
    %288 = vmatpush1.msra.mxu0 0.0
    %289 = vmatprep.subr.mxu0 0.0
    %290 = vmatpush1.msra.mxu0 0.0
    %291 = vmatprep.subr.mxu0 0.0
    %292 = vmatpush1.msra.mxu0 0.0
    %293 = vmatprep.subr.mxu0 0.0
    %294 = vmatpush1.msra.mxu0 0.0
    %295 = vmatprep.subr.mxu0 0.0
    %296 = vmatpush1.msra.mxu0 %v267
    %297 = vmatprep.subr.mxu0 0.0
    %298 = vmatpush1.msra.mxu0 %v266
    %299 = vmatprep.subr.mxu0 0.0
    %300 = vmatpush1.msra.mxu0 %v265
    %301 = vmatprep.subr.mxu0 0.0
    %302 = vmatpush1.msra.mxu0 %v264
    %303 = vmatprep.subr.mxu0 0.0
    %304 = vmatpush2.msra.mxu0 0.0
    %305 = vmatprep.subr.mxu0 0.0
    %306 = vmatpush2.msra.mxu0 0.0
    %307 = vmatprep.subr.mxu0 0.0
    %308 = vmatpush2.msra.mxu0 0.0
    %309 = vmatprep.subr.mxu0 0.0
    %310 = vmatpush2.msra.mxu0 0.0
    %311 = vmatprep.subr.mxu0 0.0
    %312 = vmatpush2.msra.mxu0 0.0
    %313 = vmatprep.subr.mxu0 0.0
    %314 = vmatpush2.msra.mxu0 0.0
    %315 = vmatprep.subr.mxu0 0.0
    %316 = vmatpush2.msra.mxu0 0.0
    %317 = vmatprep.subr.mxu0 0.0
    %318 = vmatpush2.msra.mxu0 0.0
    %319 = vmatprep.subr.mxu0 0.0
    %320 = vmatpush2.msra.mxu0 0.0
    %321 = vmatprep.subr.mxu0 0.0
    %322 = vmatpush2.msra.mxu0 0.0
    %323 = vmatprep.subr.mxu0 0.0
    %324 = vmatpush2.msra.mxu0 0.0
    %325 = vmatprep.subr.mxu0 0.0
    %326 = vmatpush2.msra.mxu0 0.0
    %327 = vmatprep.subr.mxu0 0.0
    %328 = vmatpush2.msra.mxu0 0.0
    %329 = vmatprep.subr.mxu0 0.0
    %330 = vmatpush2.msra.mxu0 0.0
    %331 = vmatprep.subr.mxu0 0.0
    %332 = vmatpush2.msra.mxu0 0.0
    %333 = vmatprep.subr.mxu0 0.0
    %334 = vmatpush2.msra.mxu0 0.0
    %335 = vmatprep.mubr.f32.mxu0 0.0
    %336 = vmatmul.mubr.f32.gmra.mxu0 %v269
    %v337 = vpop.f32.mrf.mxu0
    %v338 = vadd.f32 0.0, %v337
    %v339 = vpop.f32.mrf.mxu0
    %340 = vdwg.mxu0
    %v341 = vld [vmem:[%s9] sm:$0x3]
    %v342 = vmul.f32 %v338, %v338
    %v343 = vsel %vm149, %v338, 0.0
    %v344 = vrot.slane %v343, 4
    %v345 = vadd.f32 %v343, %v344
    %v346 = vrot.slane %v345, 2
    %v347 = vadd.f32 %v345, %v346
    %v348 = vrot.slane %v347, 1
    %v349 = vadd.f32 %v347, %v348
    %v350 = vsel %vm149, %v342, 0.0
    %v351 = vrot.slane %v350, 4
    %v352 = vadd.f32 %v350, %v351
    %v353 = vrot.slane %v352, 2
    %v354 = vadd.f32 %v352, %v353
    %v355 = vrot.slane %v354, 1
    %v356 = vadd.f32 %v354, %v355
    %v357 = vmul.f32 %v349, %v239
    %v358 = vmul.f32 %v356, %v239
    %v359 = vmul.f32 %v357, %v357
    %v360 = vsub.f32 %v358, %v359
    %v361 = vmax.f32 %v360, 0.0
    %v362 = vadd.f32 %v361, 1e-05
    %v363 = vrsqrt.pop %v362
    %v364 = vmul.f32 %v341, %v363
    %v365 = vmul.f32 %v357, %v364
    %v367 = vrot.slane %v365, 7
    %v369 = vsub.f32 %v341, %v367
    %v370 = vlaneseq
    %v371 = vshrl.u32 %v370, 7
    %v372 = vsub.s32 0, %v371
    %v373 = vrot.slane %v364, %v372
    %v374 = vmul.f32 %v338, %v373
    %v375 = vlaneseq
    %v376 = vshrl.u32 %v375, 7
    %v377 = vsub.s32 1, %v376
    %v378 = vrot.slane %v369, %v377
    %v379 = vadd.f32 %v374, %v378
    %v380 = vmax.f32 %v379, 0.0
    %v381 = vld [vmem:[#allocation8] sm:$0xff]
    %v382 = vld [vmem:[#allocation8 + $0x8] sm:$0xff]
    %v383 = vld [vmem:[#allocation8 + $0x10] sm:$0xff]
    %v384 = vld [vmem:[#allocation8 + $0x18] sm:$0xff]
    %v386 = vsel %vm149, %v380, 0
    %388 = vmatprep.subr.mxu0 0.0
    %389 = vmatpush1.msra.mxu0 0.0
    %390 = vmatprep.subr.mxu0 0.0
    %391 = vmatpush1.msra.mxu0 0.0
    %392 = vmatprep.subr.mxu0 0.0
    %393 = vmatpush1.msra.mxu0 0.0
    %394 = vmatprep.subr.mxu0 0.0
    %395 = vmatpush1.msra.mxu0 0.0
    %396 = vmatprep.subr.mxu0 0.0
    %397 = vmatpush1.msra.mxu0 0.0
    %398 = vmatprep.subr.mxu0 0.0
    %399 = vmatpush1.msra.mxu0 0.0
    %400 = vmatprep.subr.mxu0 0.0
    %401 = vmatpush1.msra.mxu0 0.0
    %402 = vmatprep.subr.mxu0 0.0
    %403 = vmatpush1.msra.mxu0 0.0
    %404 = vmatprep.subr.mxu0 0.0
    %405 = vmatpush1.msra.mxu0 0.0
    %406 = vmatprep.subr.mxu0 0.0
    %407 = vmatpush1.msra.mxu0 0.0
    %408 = vmatprep.subr.mxu0 0.0
    %409 = vmatpush1.msra.mxu0 0.0
    %410 = vmatprep.subr.mxu0 0.0
    %411 = vmatpush1.msra.mxu0 0.0
    %412 = vmatprep.subr.mxu0 0.0
    %413 = vmatpush1.msra.mxu0 %v384
    %414 = vmatprep.subr.mxu0 0.0
    %415 = vmatpush1.msra.mxu0 %v383
    %416 = vmatprep.subr.mxu0 0.0
    %417 = vmatpush1.msra.mxu0 %v382
    %418 = vmatprep.subr.mxu0 0.0
    %419 = vmatpush1.msra.mxu0 %v381
    %420 = vmatprep.subr.mxu0 0.0
    %421 = vmatpush2.msra.mxu0 0.0
    %422 = vmatprep.subr.mxu0 0.0
    %423 = vmatpush2.msra.mxu0 0.0
    %424 = vmatprep.subr.mxu0 0.0
    %425 = vmatpush2.msra.mxu0 0.0
    %426 = vmatprep.subr.mxu0 0.0
    %427 = vmatpush2.msra.mxu0 0.0
    %428 = vmatprep.subr.mxu0 0.0
    %429 = vmatpush2.msra.mxu0 0.0
    %430 = vmatprep.subr.mxu0 0.0
    %431 = vmatpush2.msra.mxu0 0.0
    %432 = vmatprep.subr.mxu0 0.0
    %433 = vmatpush2.msra.mxu0 0.0
    %434 = vmatprep.subr.mxu0 0.0
    %435 = vmatpush2.msra.mxu0 0.0
    %436 = vmatprep.subr.mxu0 0.0
    %437 = vmatpush2.msra.mxu0 0.0
    %438 = vmatprep.subr.mxu0 0.0
    %439 = vmatpush2.msra.mxu0 0.0
    %440 = vmatprep.subr.mxu0 0.0
    %441 = vmatpush2.msra.mxu0 0.0
    %442 = vmatprep.subr.mxu0 0.0
    %443 = vmatpush2.msra.mxu0 0.0
    %444 = vmatprep.subr.mxu0 0.0
    %445 = vmatpush2.msra.mxu0 0.0
    %446 = vmatprep.subr.mxu0 0.0
    %447 = vmatpush2.msra.mxu0 0.0
    %448 = vmatprep.subr.mxu0 0.0
    %449 = vmatpush2.msra.mxu0 0.0
    %450 = vmatprep.subr.mxu0 0.0
    %451 = vmatpush2.msra.mxu0 0.0
    %452 = vmatprep.mubr.f32.mxu0 0.0
    %453 = vmatmul.mubr.f32.gmra.mxu0 %v386
    %v454 = vpop.f32.mrf.mxu0
    %v455 = vadd.f32 0.0, %v454
    %v456 = vpop.f32.mrf.mxu0
    %457 = vdwg.mxu0
    %s458 = scalar_lea.vmem %s9, 2
    %v459 = vld [vmem:[%s458] sm:$0x3]
    %v460 = vmul.f32 %v455, %v455
    %v461 = vsel %vm149, %v455, 0.0
    %v462 = vrot.slane %v461, 4
    %v463 = vadd.f32 %v461, %v462
    %v464 = vrot.slane %v463, 2
    %v465 = vadd.f32 %v463, %v464
    %v466 = vrot.slane %v465, 1
    %v467 = vadd.f32 %v465, %v466
    %v468 = vsel %vm149, %v460, 0.0
    %v469 = vrot.slane %v468, 4
    %v470 = vadd.f32 %v468, %v469
    %v471 = vrot.slane %v470, 2
    %v472 = vadd.f32 %v470, %v471
    %v473 = vrot.slane %v472, 1
    %v474 = vadd.f32 %v472, %v473
    %v475 = vmul.f32 %v467, %v239
    %v476 = vmul.f32 %v474, %v239
    %v477 = vmul.f32 %v475, %v475
    %v478 = vsub.f32 %v476, %v477
    %v479 = vmax.f32 %v478, 0.0
    %v480 = vadd.f32 %v479, 1e-05
    %v481 = vrsqrt.pop %v480
    %v482 = vmul.f32 %v459, %v481
    %v483 = vmul.f32 %v475, %v482
    %v485 = vrot.slane %v483, 7
    %v487 = vsub.f32 %v459, %v485
    %v488 = vlaneseq
    %v489 = vshrl.u32 %v488, 7
    %v490 = vsub.s32 0, %v489
    %v491 = vrot.slane %v482, %v490
    %v492 = vmul.f32 %v455, %v491
    %v493 = vlaneseq
    %v494 = vshrl.u32 %v493, 7
    %v495 = vsub.s32 1, %v494
    %v496 = vrot.slane %v487, %v495
    %v497 = vadd.f32 %v492, %v496
    %v498 = vmax.f32 %v497, 0.0
    %s499 = scalar_lea.vmem [#allocation8], 32
    %v500 = vld [vmem:[%s499] sm:$0xff]
    %v501 = vld [vmem:[%s499 + $0x8] sm:$0xff]
    %v502 = vld [vmem:[%s499 + $0x10] sm:$0xff]
    %v503 = vld [vmem:[%s499 + $0x18] sm:$0xff]
    %v505 = vsel %vm149, %v498, 0
    %507 = vmatprep.subr.mxu0 0.0
    %508 = vmatpush1.msra.mxu0 0.0
    %509 = vmatprep.subr.mxu0 0.0
    %510 = vmatpush1.msra.mxu0 0.0
    %511 = vmatprep.subr.mxu0 0.0
    %512 = vmatpush1.msra.mxu0 0.0
    %513 = vmatprep.subr.mxu0 0.0
    %514 = vmatpush1.msra.mxu0 0.0
    %515 = vmatprep.subr.mxu0 0.0
    %516 = vmatpush1.msra.mxu0 0.0
    %517 = vmatprep.subr.mxu0 0.0
    %518 = vmatpush1.msra.mxu0 0.0
    %519 = vmatprep.subr.mxu0 0.0
    %520 = vmatpush1.msra.mxu0 0.0
    %521 = vmatprep.subr.mxu0 0.0
    %522 = vmatpush1.msra.mxu0 0.0
    %523 = vmatprep.subr.mxu0 0.0
    %524 = vmatpush1.msra.mxu0 0.0
    %525 = vmatprep.subr.mxu0 0.0
    %526 = vmatpush1.msra.mxu0 0.0
    %527 = vmatprep.subr.mxu0 0.0
    %528 = vmatpush1.msra.mxu0 0.0
    %529 = vmatprep.subr.mxu0 0.0
    %530 = vmatpush1.msra.mxu0 0.0
    %531 = vmatprep.subr.mxu0 0.0
    %532 = vmatpush1.msra.mxu0 %v503
    %533 = vmatprep.subr.mxu0 0.0
    %534 = vmatpush1.msra.mxu0 %v502
    %535 = vmatprep.subr.mxu0 0.0
    %536 = vmatpush1.msra.mxu0 %v501
    %537 = vmatprep.subr.mxu0 0.0
    %538 = vmatpush1.msra.mxu0 %v500
    %539 = vmatprep.subr.mxu0 0.0
    %540 = vmatpush2.msra.mxu0 0.0
    %541 = vmatprep.subr.mxu0 0.0
    %542 = vmatpush2.msra.mxu0 0.0
    %543 = vmatprep.subr.mxu0 0.0
    %544 = vmatpush2.msra.mxu0 0.0
    %545 = vmatprep.subr.mxu0 0.0
    %546 = vmatpush2.msra.mxu0 0.0
    %547 = vmatprep.subr.mxu0 0.0
    %548 = vmatpush2.msra.mxu0 0.0
    %549 = vmatprep.subr.mxu0 0.0
    %550 = vmatpush2.msra.mxu0 0.0
    %551 = vmatprep.subr.mxu0 0.0
    %552 = vmatpush2.msra.mxu0 0.0
    %553 = vmatprep.subr.mxu0 0.0
    %554 = vmatpush2.msra.mxu0 0.0
    %555 = vmatprep.subr.mxu0 0.0
    %556 = vmatpush2.msra.mxu0 0.0
    %557 = vmatprep.subr.mxu0 0.0
    %558 = vmatpush2.msra.mxu0 0.0
    %559 = vmatprep.subr.mxu0 0.0
    %560 = vmatpush2.msra.mxu0 0.0
    %561 = vmatprep.subr.mxu0 0.0
    %562 = vmatpush2.msra.mxu0 0.0
    %563 = vmatprep.subr.mxu0 0.0
    %564 = vmatpush2.msra.mxu0 0.0
    %565 = vmatprep.subr.mxu0 0.0
    %566 = vmatpush2.msra.mxu0 0.0
    %567 = vmatprep.subr.mxu0 0.0
    %568 = vmatpush2.msra.mxu0 0.0
    %569 = vmatprep.subr.mxu0 0.0
    %570 = vmatpush2.msra.mxu0 0.0
    %571 = vmatprep.mubr.f32.mxu0 0.0
    %572 = vmatmul.mubr.f32.gmra.mxu0 %v505
    %v573 = vpop.f32.mrf.mxu0
    %v574 = vadd.f32 0.0, %v573
    %v575 = vpop.f32.mrf.mxu0
    %576 = vdwg.mxu0
    %s577 = scalar_lea.vmem %s9, 4
    %v578 = vld [vmem:[%s577] sm:$0x3]
    %v579 = vmul.f32 %v574, %v574
    %v580 = vsel %vm149, %v574, 0.0
    %v581 = vrot.slane %v580, 4
    %v582 = vadd.f32 %v580, %v581
    %v583 = vrot.slane %v582, 2
    %v584 = vadd.f32 %v582, %v583
    %v585 = vrot.slane %v584, 1
    %v586 = vadd.f32 %v584, %v585
    %v587 = vsel %vm149, %v579, 0.0
    %v588 = vrot.slane %v587, 4
    %v589 = vadd.f32 %v587, %v588
    %v590 = vrot.slane %v589, 2
    %v591 = vadd.f32 %v589, %v590
    %v592 = vrot.slane %v591, 1
    %v593 = vadd.f32 %v591, %v592
    %v594 = vmul.f32 %v586, %v239
    %v595 = vmul.f32 %v593, %v239
    %v596 = vmul.f32 %v594, %v594
    %v597 = vsub.f32 %v595, %v596
    %v598 = vmax.f32 %v597, 0.0
    %v599 = vadd.f32 %v598, 1e-05
    %v600 = vrsqrt.pop %v599
    %v601 = vmul.f32 %v578, %v600
    %v602 = vmul.f32 %v594, %v601
    %v604 = vrot.slane %v602, 7
    %v606 = vsub.f32 %v578, %v604
    %v607 = vlaneseq
    %v608 = vshrl.u32 %v607, 7
    %v609 = vsub.s32 0, %v608
    %v610 = vrot.slane %v601, %v609
    %v611 = vmul.f32 %v574, %v610
    %v612 = vlaneseq
    %v613 = vshrl.u32 %v612, 7
    %v614 = vsub.s32 1, %v613
    %v615 = vrot.slane %v606, %v614
    %v616 = vadd.f32 %v611, %v615
    %v617 = vadd.f32 %v616, %v380
    %v618 = vmax.f32 %v617, 0.0
    %s619 = scalar_lea.vmem [#allocation8], 64
    %v620 = vld [vmem:[%s619] sm:$0xff]
    %v621 = vld [vmem:[%s619 + $0x8] sm:$0xff]
    %v622 = vld [vmem:[%s619 + $0x10] sm:$0xff]
    %v623 = vld [vmem:[%s619 + $0x18] sm:$0xff]
    %v625 = vsel %vm149, %v618, 0
    %627 = vmatprep.subr.mxu0 0.0
    %628 = vmatpush1.msra.mxu0 0.0
    %629 = vmatprep.subr.mxu0 0.0
    %630 = vmatpush1.msra.mxu0 0.0
    %631 = vmatprep.subr.mxu0 0.0
    %632 = vmatpush1.msra.mxu0 0.0
    %633 = vmatprep.subr.mxu0 0.0
    %634 = vmatpush1.msra.mxu0 0.0
    %635 = vmatprep.subr.mxu0 0.0
    %636 = vmatpush1.msra.mxu0 0.0
    %637 = vmatprep.subr.mxu0 0.0
    %638 = vmatpush1.msra.mxu0 0.0
    %639 = vmatprep.subr.mxu0 0.0
    %640 = vmatpush1.msra.mxu0 0.0
    %641 = vmatprep.subr.mxu0 0.0
    %642 = vmatpush1.msra.mxu0 0.0
    %643 = vmatprep.subr.mxu0 0.0
    %644 = vmatpush1.msra.mxu0 0.0
    %645 = vmatprep.subr.mxu0 0.0
    %646 = vmatpush1.msra.mxu0 0.0
    %647 = vmatprep.subr.mxu0 0.0
    %648 = vmatpush1.msra.mxu0 0.0
    %649 = vmatprep.subr.mxu0 0.0
    %650 = vmatpush1.msra.mxu0 0.0
    %651 = vmatprep.subr.mxu0 0.0
    %652 = vmatpush1.msra.mxu0 %v623
    %653 = vmatprep.subr.mxu0 0.0
    %654 = vmatpush1.msra.mxu0 %v622
    %655 = vmatprep.subr.mxu0 0.0
    %656 = vmatpush1.msra.mxu0 %v621
    %657 = vmatprep.subr.mxu0 0.0
    %658 = vmatpush1.msra.mxu0 %v620
    %659 = vmatprep.subr.mxu0 0.0
    %660 = vmatpush2.msra.mxu0 0.0
    %661 = vmatprep.subr.mxu0 0.0
    %662 = vmatpush2.msra.mxu0 0.0
    %663 = vmatprep.subr.mxu0 0.0
    %664 = vmatpush2.msra.mxu0 0.0
    %665 = vmatprep.subr.mxu0 0.0
    %666 = vmatpush2.msra.mxu0 0.0
    %667 = vmatprep.subr.mxu0 0.0
    %668 = vmatpush2.msra.mxu0 0.0
    %669 = vmatprep.subr.mxu0 0.0
    %670 = vmatpush2.msra.mxu0 0.0
    %671 = vmatprep.subr.mxu0 0.0
    %672 = vmatpush2.msra.mxu0 0.0
    %673 = vmatprep.subr.mxu0 0.0
    %674 = vmatpush2.msra.mxu0 0.0
    %675 = vmatprep.subr.mxu0 0.0
    %676 = vmatpush2.msra.mxu0 0.0
    %677 = vmatprep.subr.mxu0 0.0
    %678 = vmatpush2.msra.mxu0 0.0
    %679 = vmatprep.subr.mxu0 0.0
    %680 = vmatpush2.msra.mxu0 0.0
    %681 = vmatprep.subr.mxu0 0.0
    %682 = vmatpush2.msra.mxu0 0.0
    %683 = vmatprep.subr.mxu0 0.0
    %684 = vmatpush2.msra.mxu0 0.0
    %685 = vmatprep.subr.mxu0 0.0
    %686 = vmatpush2.msra.mxu0 0.0
    %687 = vmatprep.subr.mxu0 0.0
    %688 = vmatpush2.msra.mxu0 0.0
    %689 = vmatprep.subr.mxu0 0.0
    %690 = vmatpush2.msra.mxu0 0.0
    %691 = vmatprep.mubr.f32.mxu0 0.0
    %692 = vmatmul.mubr.f32.gmra.mxu0 %v625
    %v693 = vpop.f32.mrf.mxu0
    %v694 = vadd.f32 0.0, %v693
    %v695 = vpop.f32.mrf.mxu0
    %696 = vdwg.mxu0
    %s697 = scalar_lea.vmem %s9, 6
    %v698 = vld [vmem:[%s697] sm:$0x3]
    %v699 = vmul.f32 %v694, %v694
    %v700 = vsel %vm149, %v694, 0.0
    %v701 = vrot.slane %v700, 4
    %v702 = vadd.f32 %v700, %v701
    %v703 = vrot.slane %v702, 2
    %v704 = vadd.f32 %v702, %v703
    %v705 = vrot.slane %v704, 1
    %v706 = vadd.f32 %v704, %v705
    %v707 = vsel %vm149, %v699, 0.0
    %v708 = vrot.slane %v707, 4
    %v709 = vadd.f32 %v707, %v708
    %v710 = vrot.slane %v709, 2
    %v711 = vadd.f32 %v709, %v710
    %v712 = vrot.slane %v711, 1
    %v713 = vadd.f32 %v711, %v712
    %v714 = vmul.f32 %v706, %v239
    %v715 = vmul.f32 %v713, %v239
    %v716 = vmul.f32 %v714, %v714
    %v717 = vsub.f32 %v715, %v716
    %v718 = vmax.f32 %v717, 0.0
    %v719 = vadd.f32 %v718, 1e-05
    %v720 = vrsqrt.pop %v719
    %v721 = vmul.f32 %v698, %v720
    %v722 = vmul.f32 %v714, %v721
    %v724 = vrot.slane %v722, 7
    %v726 = vsub.f32 %v698, %v724
    %v727 = vlaneseq
    %v728 = vshrl.u32 %v727, 7
    %v729 = vsub.s32 0, %v728
    %v730 = vrot.slane %v721, %v729
    %v731 = vmul.f32 %v694, %v730
    %v732 = vlaneseq
    %v733 = vshrl.u32 %v732, 7
    %v734 = vsub.s32 1, %v733
    %v735 = vrot.slane %v726, %v734
    %v736 = vadd.f32 %v731, %v735
    %v737 = vmax.f32 %v736, 0.0
    %s738 = scalar_lea.vmem [#allocation8], 96
    %v739 = vld [vmem:[%s738] sm:$0xff]
    %v740 = vld [vmem:[%s738 + $0x8] sm:$0xff]
    %v741 = vld [vmem:[%s738 + $0x10] sm:$0xff]
    %v742 = vld [vmem:[%s738 + $0x18] sm:$0xff]
    %v744 = vsel %vm149, %v737, 0
    %746 = vmatprep.subr.mxu0 0.0
    %747 = vmatpush1.msra.mxu0 0.0
    %748 = vmatprep.subr.mxu0 0.0
    %749 = vmatpush1.msra.mxu0 0.0
    %750 = vmatprep.subr.mxu0 0.0
    %751 = vmatpush1.msra.mxu0 0.0
    %752 = vmatprep.subr.mxu0 0.0
    %753 = vmatpush1.msra.mxu0 0.0
    %754 = vmatprep.subr.mxu0 0.0
    %755 = vmatpush1.msra.mxu0 0.0
    %756 = vmatprep.subr.mxu0 0.0
    %757 = vmatpush1.msra.mxu0 0.0
    %758 = vmatprep.subr.mxu0 0.0
    %759 = vmatpush1.msra.mxu0 0.0
    %760 = vmatprep.subr.mxu0 0.0
    %761 = vmatpush1.msra.mxu0 0.0
    %762 = vmatprep.subr.mxu0 0.0
    %763 = vmatpush1.msra.mxu0 0.0
    %764 = vmatprep.subr.mxu0 0.0
    %765 = vmatpush1.msra.mxu0 0.0
    %766 = vmatprep.subr.mxu0 0.0
    %767 = vmatpush1.msra.mxu0 0.0
    %768 = vmatprep.subr.mxu0 0.0
    %769 = vmatpush1.msra.mxu0 0.0
    %770 = vmatprep.subr.mxu0 0.0
    %771 = vmatpush1.msra.mxu0 %v742
    %772 = vmatprep.subr.mxu0 0.0
    %773 = vmatpush1.msra.mxu0 %v741
    %774 = vmatprep.subr.mxu0 0.0
    %775 = vmatpush1.msra.mxu0 %v740
    %776 = vmatprep.subr.mxu0 0.0
    %777 = vmatpush1.msra.mxu0 %v739
    %778 = vmatprep.subr.mxu0 0.0
    %779 = vmatpush2.msra.mxu0 0.0
    %780 = vmatprep.subr.mxu0 0.0
    %781 = vmatpush2.msra.mxu0 0.0
    %782 = vmatprep.subr.mxu0 0.0
    %783 = vmatpush2.msra.mxu0 0.0
    %784 = vmatprep.subr.mxu0 0.0
    %785 = vmatpush2.msra.mxu0 0.0
    %786 = vmatprep.subr.mxu0 0.0
    %787 = vmatpush2.msra.mxu0 0.0
    %788 = vmatprep.subr.mxu0 0.0
    %789 = vmatpush2.msra.mxu0 0.0
    %790 = vmatprep.subr.mxu0 0.0
    %791 = vmatpush2.msra.mxu0 0.0
    %792 = vmatprep.subr.mxu0 0.0
    %793 = vmatpush2.msra.mxu0 0.0
    %794 = vmatprep.subr.mxu0 0.0
    %795 = vmatpush2.msra.mxu0 0.0
    %796 = vmatprep.subr.mxu0 0.0
    %797 = vmatpush2.msra.mxu0 0.0
    %798 = vmatprep.subr.mxu0 0.0
    %799 = vmatpush2.msra.mxu0 0.0
    %800 = vmatprep.subr.mxu0 0.0
    %801 = vmatpush2.msra.mxu0 0.0
    %802 = vmatprep.subr.mxu0 0.0
    %803 = vmatpush2.msra.mxu0 0.0
    %804 = vmatprep.subr.mxu0 0.0
    %805 = vmatpush2.msra.mxu0 0.0
    %806 = vmatprep.subr.mxu0 0.0
    %807 = vmatpush2.msra.mxu0 0.0
    %808 = vmatprep.subr.mxu0 0.0
    %809 = vmatpush2.msra.mxu0 0.0
    %810 = vmatprep.mubr.f32.mxu0 0.0
    %811 = vmatmul.mubr.f32.gmra.mxu0 %v744
    %v812 = vpop.f32.mrf.mxu0
    %v813 = vadd.f32 0.0, %v812
    %v814 = vpop.f32.mrf.mxu0
    %815 = vdwg.mxu0
    %s816 = scalar_lea.vmem %s9, 8
    %v817 = vld [vmem:[%s816] sm:$0x3]
    %v818 = vmul.f32 %v813, %v813
    %v819 = vsel %vm149, %v813, 0.0
    %v820 = vrot.slane %v819, 4
    %v821 = vadd.f32 %v819, %v820
    %v822 = vrot.slane %v821, 2
    %v823 = vadd.f32 %v821, %v822
    %v824 = vrot.slane %v823, 1
    %v825 = vadd.f32 %v823, %v824
    %v826 = vsel %vm149, %v818, 0.0
    %v827 = vrot.slane %v826, 4
    %v828 = vadd.f32 %v826, %v827
    %v829 = vrot.slane %v828, 2
    %v830 = vadd.f32 %v828, %v829
    %v831 = vrot.slane %v830, 1
    %v832 = vadd.f32 %v830, %v831
    %v833 = vmul.f32 %v825, %v239
    %v834 = vmul.f32 %v832, %v239
    %v835 = vmul.f32 %v833, %v833
    %v836 = vsub.f32 %v834, %v835
    %v837 = vmax.f32 %v836, 0.0
    %v838 = vadd.f32 %v837, 1e-05
    %v839 = vrsqrt.pop %v838
    %v840 = vmul.f32 %v817, %v839
    %v841 = vmul.f32 %v833, %v840
    %v843 = vrot.slane %v841, 7
    %v845 = vsub.f32 %v817, %v843
    %v846 = vlaneseq
    %v847 = vshrl.u32 %v846, 7
    %v848 = vsub.s32 0, %v847
    %v849 = vrot.slane %v840, %v848
    %v850 = vmul.f32 %v813, %v849
    %v851 = vlaneseq
    %v852 = vshrl.u32 %v851, 7
    %v853 = vsub.s32 1, %v852
    %v854 = vrot.slane %v845, %v853
    %v855 = vadd.f32 %v850, %v854
    %v856 = vadd.f32 %v855, %v618
    %v857 = vmax.f32 %v856, 0.0
    %v858 = vld [vmem:[#allocation10] sm:$0xff]
    %v859 = vld [vmem:[#allocation10 + $0x8] sm:$0xff]
    %v860 = vld [vmem:[#allocation10 + $0x10] sm:$0xff]
    %v861 = vld [vmem:[#allocation10 + $0x18] sm:$0xff]
    %v863 = vsel %vm149, %v857, 0
    %865 = vmatprep.subr.mxu0 0.0
    %866 = vmatpush1.msra.mxu0 0.0
    %867 = vmatprep.subr.mxu0 0.0
    %868 = vmatpush1.msra.mxu0 0.0
    %869 = vmatprep.subr.mxu0 0.0
    %870 = vmatpush1.msra.mxu0 0.0
    %871 = vmatprep.subr.mxu0 0.0
    %872 = vmatpush1.msra.mxu0 0.0
    %873 = vmatprep.subr.mxu0 0.0
    %874 = vmatpush1.msra.mxu0 0.0
    %875 = vmatprep.subr.mxu0 0.0
    %876 = vmatpush1.msra.mxu0 0.0
    %877 = vmatprep.subr.mxu0 0.0
    %878 = vmatpush1.msra.mxu0 0.0
    %879 = vmatprep.subr.mxu0 0.0
    %880 = vmatpush1.msra.mxu0 0.0
    %881 = vmatprep.subr.mxu0 0.0
    %882 = vmatpush1.msra.mxu0 0.0
    %883 = vmatprep.subr.mxu0 0.0
    %884 = vmatpush1.msra.mxu0 0.0
    %885 = vmatprep.subr.mxu0 0.0
    %886 = vmatpush1.msra.mxu0 0.0
    %887 = vmatprep.subr.mxu0 0.0
    %888 = vmatpush1.msra.mxu0 0.0
    %889 = vmatprep.subr.mxu0 0.0
    %890 = vmatpush1.msra.mxu0 %v861
    %891 = vmatprep.subr.mxu0 0.0
    %892 = vmatpush1.msra.mxu0 %v860
    %893 = vmatprep.subr.mxu0 0.0
    %894 = vmatpush1.msra.mxu0 %v859
    %895 = vmatprep.subr.mxu0 0.0
    %896 = vmatpush1.msra.mxu0 %v858
    %897 = vmatprep.subr.mxu0 0.0
    %898 = vmatpush2.msra.mxu0 0.0
    %899 = vmatprep.subr.mxu0 0.0
    %900 = vmatpush2.msra.mxu0 0.0
    %901 = vmatprep.subr.mxu0 0.0
    %902 = vmatpush2.msra.mxu0 0.0
    %903 = vmatprep.subr.mxu0 0.0
    %904 = vmatpush2.msra.mxu0 0.0
    %905 = vmatprep.subr.mxu0 0.0
    %906 = vmatpush2.msra.mxu0 0.0
    %907 = vmatprep.subr.mxu0 0.0
    %908 = vmatpush2.msra.mxu0 0.0
    %909 = vmatprep.subr.mxu0 0.0
    %910 = vmatpush2.msra.mxu0 0.0
    %911 = vmatprep.subr.mxu0 0.0
    %912 = vmatpush2.msra.mxu0 0.0
    %913 = vmatprep.subr.mxu0 0.0
    %914 = vmatpush2.msra.mxu0 0.0
    %915 = vmatprep.subr.mxu0 0.0
    %916 = vmatpush2.msra.mxu0 0.0
    %917 = vmatprep.subr.mxu0 0.0
    %918 = vmatpush2.msra.mxu0 0.0
    %919 = vmatprep.subr.mxu0 0.0
    %920 = vmatpush2.msra.mxu0 0.0
    %921 = vmatprep.subr.mxu0 0.0
    %922 = vmatpush2.msra.mxu0 0.0
    %923 = vmatprep.subr.mxu0 0.0
    %924 = vmatpush2.msra.mxu0 0.0
    %925 = vmatprep.subr.mxu0 0.0
    %926 = vmatpush2.msra.mxu0 0.0
    %927 = vmatprep.subr.mxu0 0.0
    %928 = vmatpush2.msra.mxu0 0.0
    %929 = vmatprep.mubr.f32.mxu0 0.0
    %930 = vmatmul.mubr.f32.gmra.mxu0 %v863
    %v931 = vpop.f32.mrf.mxu0
    %v932 = vadd.f32 0.0, %v931
    %v933 = vpop.f32.mrf.mxu0
    %934 = vdwg.mxu0
    %v935 = vld [vmem:[%s10] sm:$0x3]
    %v936 = vmul.f32 %v932, %v932
    %vm937 = vcmask 785408
    %v938 = vsel %vm937, %v932, 0.0
    %v939 = vrot.slane %v938, 4
    %v940 = vadd.f32 %v938, %v939
    %v941 = vrot.slane %v940, 2
    %v942 = vadd.f32 %v940, %v941
    %v943 = vrot.slane %v942, 1
    %v944 = vadd.f32 %v942, %v943
    %v945 = vsel %vm937, %v936, 0.0
    %v946 = vrot.slane %v945, 4
    %v947 = vadd.f32 %v945, %v946
    %v948 = vrot.slane %v947, 2
    %v949 = vadd.f32 %v947, %v948
    %v950 = vrot.slane %v949, 1
    %v951 = vadd.f32 %v949, %v950
    %v952 = vmul.f32 %v944, %v239
    %v953 = vmul.f32 %v951, %v239
    %v954 = vmul.f32 %v952, %v952
    %v955 = vsub.f32 %v953, %v954
    %v956 = vmax.f32 %v955, 0.0
    %v957 = vadd.f32 %v956, 1e-05
    %v958 = vrsqrt.pop %v957
    %v959 = vmul.f32 %v935, %v958
    %v960 = vmul.f32 %v952, %v959
    %v962 = vrot.slane %v960, 7
    %v964 = vsub.f32 %v935, %v962
    %v965 = vlaneseq
    %v966 = vshrl.u32 %v965, 7
    %v967 = vsub.s32 0, %v966
    %v968 = vrot.slane %v959, %v967
    %v969 = vmul.f32 %v932, %v968
    %v970 = vlaneseq
    %v971 = vshrl.u32 %v970, 7
    %v972 = vsub.s32 1, %v971
    %v973 = vrot.slane %v964, %v972
    %v974 = vadd.f32 %v969, %v973
    %v975 = vmax.f32 %v974, 0.0
    %v976 = vld [vmem:[#allocation11] sm:$0xff]
    %v977 = vld [vmem:[#allocation11 + $0x8] sm:$0xff]
    %v978 = vld [vmem:[#allocation11 + $0x10] sm:$0xff]
    %v979 = vld [vmem:[#allocation11 + $0x18] sm:$0xff]
    %v981 = vsel %vm149, %v975, 0
    %983 = vmatprep.subr.mxu0 0.0
    %984 = vmatpush1.msra.mxu0 0.0
    %985 = vmatprep.subr.mxu0 0.0
    %986 = vmatpush1.msra.mxu0 0.0
    %987 = vmatprep.subr.mxu0 0.0
    %988 = vmatpush1.msra.mxu0 0.0
    %989 = vmatprep.subr.mxu0 0.0
    %990 = vmatpush1.msra.mxu0 0.0
    %991 = vmatprep.subr.mxu0 0.0
    %992 = vmatpush1.msra.mxu0 0.0
    %993 = vmatprep.subr.mxu0 0.0
    %994 = vmatpush1.msra.mxu0 0.0
    %995 = vmatprep.subr.mxu0 0.0
    %996 = vmatpush1.msra.mxu0 0.0
    %997 = vmatprep.subr.mxu0 0.0
    %998 = vmatpush1.msra.mxu0 0.0
    %999 = vmatprep.subr.mxu0 0.0
    %1000 = vmatpush1.msra.mxu0 0.0
    %1001 = vmatprep.subr.mxu0 0.0
    %1002 = vmatpush1.msra.mxu0 0.0
    %1003 = vmatprep.subr.mxu0 0.0
    %1004 = vmatpush1.msra.mxu0 0.0
    %1005 = vmatprep.subr.mxu0 0.0
    %1006 = vmatpush1.msra.mxu0 0.0
    %1007 = vmatprep.subr.mxu0 0.0
    %1008 = vmatpush1.msra.mxu0 %v979
    %1009 = vmatprep.subr.mxu0 0.0
    %1010 = vmatpush1.msra.mxu0 %v978
    %1011 = vmatprep.subr.mxu0 0.0
    %1012 = vmatpush1.msra.mxu0 %v977
    %1013 = vmatprep.subr.mxu0 0.0
    %1014 = vmatpush1.msra.mxu0 %v976
    %1015 = vmatprep.subr.mxu0 0.0
    %1016 = vmatpush2.msra.mxu0 0.0
    %1017 = vmatprep.subr.mxu0 0.0
    %1018 = vmatpush2.msra.mxu0 0.0
    %1019 = vmatprep.subr.mxu0 0.0
    %1020 = vmatpush2.msra.mxu0 0.0
    %1021 = vmatprep.subr.mxu0 0.0
    %1022 = vmatpush2.msra.mxu0 0.0
    %1023 = vmatprep.subr.mxu0 0.0
    %1024 = vmatpush2.msra.mxu0 0.0
    %1025 = vmatprep.subr.mxu0 0.0
    %1026 = vmatpush2.msra.mxu0 0.0
    %1027 = vmatprep.subr.mxu0 0.0
    %1028 = vmatpush2.msra.mxu0 0.0
    %1029 = vmatprep.subr.mxu0 0.0
    %1030 = vmatpush2.msra.mxu0 0.0
    %1031 = vmatprep.subr.mxu0 0.0
    %1032 = vmatpush2.msra.mxu0 0.0
    %1033 = vmatprep.subr.mxu0 0.0
    %1034 = vmatpush2.msra.mxu0 0.0
    %1035 = vmatprep.subr.mxu0 0.0
    %1036 = vmatpush2.msra.mxu0 0.0
    %1037 = vmatprep.subr.mxu0 0.0
    %1038 = vmatpush2.msra.mxu0 0.0
    %1039 = vmatprep.subr.mxu0 0.0
    %1040 = vmatpush2.msra.mxu0 0.0
    %1041 = vmatprep.subr.mxu0 0.0
    %1042 = vmatpush2.msra.mxu0 0.0
    %1043 = vmatprep.subr.mxu0 0.0
    %1044 = vmatpush2.msra.mxu0 0.0
    %1045 = vmatprep.subr.mxu0 0.0
    %1046 = vmatpush2.msra.mxu0 0.0
    %1047 = vmatprep.mubr.f32.mxu0 0.0
    %1048 = vmatmul.mubr.f32.gmra.mxu0 %v981
    %v1049 = vpop.f32.mrf.mxu0
    %v1050 = vadd.f32 0.0, %v1049
    %v1051 = vpop.f32.mrf.mxu0
    %1052 = vdwg.mxu0
    %s1053 = scalar_lea.vmem [#allocation11], 32
    %v1054 = vld [vmem:[%s1053] sm:$0xff]
    %v1055 = vld [vmem:[%s1053 + $0x8] sm:$0xff]
    %v1056 = vld [vmem:[%s1053 + $0x10] sm:$0xff]
    %v1057 = vld [vmem:[%s1053 + $0x18] sm:$0xff]
    %1058 = vrot.lane.b32.xlu0 %v975, 96
    %v1059 = vpop.permute.xlu0 %1058
    %v1060 = vsel %vm149, %v1059, 0
    %1062 = vmatprep.subr.mxu0 0.0
    %1063 = vmatpush1.msra.mxu0 0.0
    %1064 = vmatprep.subr.mxu0 0.0
    %1065 = vmatpush1.msra.mxu0 0.0
    %1066 = vmatprep.subr.mxu0 0.0
    %1067 = vmatpush1.msra.mxu0 0.0
    %1068 = vmatprep.subr.mxu0 0.0
    %1069 = vmatpush1.msra.mxu0 0.0
    %1070 = vmatprep.subr.mxu0 0.0
    %1071 = vmatpush1.msra.mxu0 0.0
    %1072 = vmatprep.subr.mxu0 0.0
    %1073 = vmatpush1.msra.mxu0 0.0
    %1074 = vmatprep.subr.mxu0 0.0
    %1075 = vmatpush1.msra.mxu0 0.0
    %1076 = vmatprep.subr.mxu0 0.0
    %1077 = vmatpush1.msra.mxu0 0.0
    %1078 = vmatprep.subr.mxu0 0.0
    %1079 = vmatpush1.msra.mxu0 0.0
    %1080 = vmatprep.subr.mxu0 0.0
    %1081 = vmatpush1.msra.mxu0 0.0
    %1082 = vmatprep.subr.mxu0 0.0
    %1083 = vmatpush1.msra.mxu0 0.0
    %1084 = vmatprep.subr.mxu0 0.0
    %1085 = vmatpush1.msra.mxu0 0.0
    %1086 = vmatprep.subr.mxu0 0.0
    %1087 = vmatpush1.msra.mxu0 %v1057
    %1088 = vmatprep.subr.mxu0 0.0
    %1089 = vmatpush1.msra.mxu0 %v1056
    %1090 = vmatprep.subr.mxu0 0.0
    %1091 = vmatpush1.msra.mxu0 %v1055
    %1092 = vmatprep.subr.mxu0 0.0
    %1093 = vmatpush1.msra.mxu0 %v1054
    %1094 = vmatprep.subr.mxu0 0.0
    %1095 = vmatpush2.msra.mxu0 0.0
    %1096 = vmatprep.subr.mxu0 0.0
    %1097 = vmatpush2.msra.mxu0 0.0
    %1098 = vmatprep.subr.mxu0 0.0
    %1099 = vmatpush2.msra.mxu0 0.0
    %1100 = vmatprep.subr.mxu0 0.0
    %1101 = vmatpush2.msra.mxu0 0.0
    %1102 = vmatprep.subr.mxu0 0.0
    %1103 = vmatpush2.msra.mxu0 0.0
    %1104 = vmatprep.subr.mxu0 0.0
    %1105 = vmatpush2.msra.mxu0 0.0
    %1106 = vmatprep.subr.mxu0 0.0
    %1107 = vmatpush2.msra.mxu0 0.0
    %1108 = vmatprep.subr.mxu0 0.0
    %1109 = vmatpush2.msra.mxu0 0.0
    %1110 = vmatprep.subr.mxu0 0.0
    %1111 = vmatpush2.msra.mxu0 0.0
    %1112 = vmatprep.subr.mxu0 0.0
    %1113 = vmatpush2.msra.mxu0 0.0
    %1114 = vmatprep.subr.mxu0 0.0
    %1115 = vmatpush2.msra.mxu0 0.0
    %1116 = vmatprep.subr.mxu0 0.0
    %1117 = vmatpush2.msra.mxu0 0.0
    %1118 = vmatprep.subr.mxu0 0.0
    %1119 = vmatpush2.msra.mxu0 0.0
    %1120 = vmatprep.subr.mxu0 0.0
    %1121 = vmatpush2.msra.mxu0 0.0
    %1122 = vmatprep.subr.mxu0 0.0
    %1123 = vmatpush2.msra.mxu0 0.0
    %1124 = vmatprep.subr.mxu0 0.0
    %1125 = vmatpush2.msra.mxu0 0.0
    %1126 = vmatprep.mubr.f32.mxu0 0.0
    %1127 = vmatmul.mubr.f32.gmra.mxu0 %v1060
    %v1128 = vpop.f32.mrf.mxu0
    %v1129 = vadd.f32 0.0, %v1128
    %v1130 = vpop.f32.mrf.mxu0
    %1131 = vdwg.mxu0
    %s1132 = scalar_lea.vmem [#allocation11], 64
    %v1133 = vld [vmem:[%s1132] sm:$0xff]
    %v1134 = vld [vmem:[%s1132 + $0x8] sm:$0xff]
    %v1135 = vld [vmem:[%s1132 + $0x10] sm:$0xff]
    %v1136 = vld [vmem:[%s1132 + $0x18] sm:$0xff]
    %1137 = vrot.lane.b32.xlu0 %v975, 64
    %v1138 = vpop.permute.xlu0 %1137
    %v1139 = vsel %vm149, %v1138, 0
    %1141 = vmatprep.subr.mxu0 0.0
    %1142 = vmatpush1.msra.mxu0 0.0
    %1143 = vmatprep.subr.mxu0 0.0
    %1144 = vmatpush1.msra.mxu0 0.0
    %1145 = vmatprep.subr.mxu0 0.0
    %1146 = vmatpush1.msra.mxu0 0.0
    %1147 = vmatprep.subr.mxu0 0.0
    %1148 = vmatpush1.msra.mxu0 0.0
    %1149 = vmatprep.subr.mxu0 0.0
    %1150 = vmatpush1.msra.mxu0 0.0
    %1151 = vmatprep.subr.mxu0 0.0
    %1152 = vmatpush1.msra.mxu0 0.0
    %1153 = vmatprep.subr.mxu0 0.0
    %1154 = vmatpush1.msra.mxu0 0.0
    %1155 = vmatprep.subr.mxu0 0.0
    %1156 = vmatpush1.msra.mxu0 0.0
    %1157 = vmatprep.subr.mxu0 0.0
    %1158 = vmatpush1.msra.mxu0 0.0
    %1159 = vmatprep.subr.mxu0 0.0
    %1160 = vmatpush1.msra.mxu0 0.0
    %1161 = vmatprep.subr.mxu0 0.0
    %1162 = vmatpush1.msra.mxu0 0.0
    %1163 = vmatprep.subr.mxu0 0.0
    %1164 = vmatpush1.msra.mxu0 0.0
    %1165 = vmatprep.subr.mxu0 0.0
    %1166 = vmatpush1.msra.mxu0 %v1136
    %1167 = vmatprep.subr.mxu0 0.0
    %1168 = vmatpush1.msra.mxu0 %v1135
    %1169 = vmatprep.subr.mxu0 0.0
    %1170 = vmatpush1.msra.mxu0 %v1134
    %1171 = vmatprep.subr.mxu0 0.0
    %1172 = vmatpush1.msra.mxu0 %v1133
    %1173 = vmatprep.subr.mxu0 0.0
    %1174 = vmatpush2.msra.mxu0 0.0
    %1175 = vmatprep.subr.mxu0 0.0
    %1176 = vmatpush2.msra.mxu0 0.0
    %1177 = vmatprep.subr.mxu0 0.0
    %1178 = vmatpush2.msra.mxu0 0.0
    %1179 = vmatprep.subr.mxu0 0.0
    %1180 = vmatpush2.msra.mxu0 0.0
    %1181 = vmatprep.subr.mxu0 0.0
    %1182 = vmatpush2.msra.mxu0 0.0
    %1183 = vmatprep.subr.mxu0 0.0
    %1184 = vmatpush2.msra.mxu0 0.0
    %1185 = vmatprep.subr.mxu0 0.0
    %1186 = vmatpush2.msra.mxu0 0.0
    %1187 = vmatprep.subr.mxu0 0.0
    %1188 = vmatpush2.msra.mxu0 0.0
    %1189 = vmatprep.subr.mxu0 0.0
    %1190 = vmatpush2.msra.mxu0 0.0
    %1191 = vmatprep.subr.mxu0 0.0
    %1192 = vmatpush2.msra.mxu0 0.0
    %1193 = vmatprep.subr.mxu0 0.0
    %1194 = vmatpush2.msra.mxu0 0.0
    %1195 = vmatprep.subr.mxu0 0.0
    %1196 = vmatpush2.msra.mxu0 0.0
    %1197 = vmatprep.subr.mxu0 0.0
    %1198 = vmatpush2.msra.mxu0 0.0
    %1199 = vmatprep.subr.mxu0 0.0
    %1200 = vmatpush2.msra.mxu0 0.0
    %1201 = vmatprep.subr.mxu0 0.0
    %1202 = vmatpush2.msra.mxu0 0.0
    %1203 = vmatprep.subr.mxu0 0.0
    %1204 = vmatpush2.msra.mxu0 0.0
    %1205 = vmatprep.mubr.f32.mxu0 0.0
    %1206 = vmatmul.mubr.f32.gmra.mxu0 %v1139
    %v1207 = vpop.f32.mrf.mxu0
    %v1208 = vadd.f32 0.0, %v1207
    %v1209 = vpop.f32.mrf.mxu0
    %1210 = vdwg.mxu0
    %1212 = vrot.lane.b32.xlu0 %v1129, 32
    %v1213 = vpop.permute.xlu0 %1212
    %1216 = vrot.lane.b32.xlu0 %v1208, 64
    %v1217 = vpop.permute.xlu0 %1216
    %v1219 = vsel %vm149, %v1050, %v1213
    %vm1220 = vcmask 523264
    %v1221 = vsel %vm1220, %v1219, %v1217
    %s1222 = scalar_lea.vmem %s10, 2
    %v1223 = vld [vmem:[%s1222] sm:$0x3]
    %v1224 = vmul.f32 %v1221, %v1221
    %v1225 = vsel %vm937, %v1221, 0.0
    %v1226 = vrot.slane %v1225, 4
    %v1227 = vadd.f32 %v1225, %v1226
    %v1228 = vrot.slane %v1227, 2
    %v1229 = vadd.f32 %v1227, %v1228
    %v1230 = vrot.slane %v1229, 1
    %v1231 = vadd.f32 %v1229, %v1230
    %v1232 = vsel %vm937, %v1224, 0.0
    %v1233 = vrot.slane %v1232, 4
    %v1234 = vadd.f32 %v1232, %v1233
    %v1235 = vrot.slane %v1234, 2
    %v1236 = vadd.f32 %v1234, %v1235
    %v1237 = vrot.slane %v1236, 1
    %v1238 = vadd.f32 %v1236, %v1237
    %v1239 = vmul.f32 %v1231, %v239
    %v1240 = vmul.f32 %v1238, %v239
    %v1241 = vmul.f32 %v1239, %v1239
    %v1242 = vsub.f32 %v1240, %v1241
    %v1243 = vmax.f32 %v1242, 0.0
    %v1244 = vadd.f32 %v1243, 1e-05
    %v1245 = vrsqrt.pop %v1244
    %v1246 = vmul.f32 %v1223, %v1245
    %v1247 = vmul.f32 %v1239, %v1246
    %v1249 = vrot.slane %v1247, 7
    %v1251 = vsub.f32 %v1223, %v1249
    %v1252 = vlaneseq
    %v1253 = vshrl.u32 %v1252, 7
    %v1254 = vsub.s32 0, %v1253
    %v1255 = vrot.slane %v1246, %v1254
    %v1256 = vmul.f32 %v1221, %v1255
    %v1257 = vlaneseq
    %v1258 = vshrl.u32 %v1257, 7
    %v1259 = vsub.s32 1, %v1258
    %v1260 = vrot.slane %v1251, %v1259
    %v1261 = vadd.f32 %v1256, %v1260
    %v1262 = vld [vmem:[#allocation13] sm:$0xff]
    %v1263 = vld [vmem:[#allocation13 + $0x8] sm:$0xff]
    %v1264 = vld [vmem:[#allocation13 + $0x10] sm:$0xff]
    %v1265 = vld [vmem:[#allocation13 + $0x18] sm:$0xff]
    %v1266 = vld [vmem:[#allocation13 + $0x20] sm:$0xff]
    %v1267 = vld [vmem:[#allocation13 + $0x28] sm:$0xff]
    %v1268 = vld [vmem:[#allocation13 + $0x30] sm:$0xff]
    %v1269 = vld [vmem:[#allocation13 + $0x38] sm:$0xff]
    %v1270 = vld [vmem:[#allocation13 + $0x40] sm:$0xff]
    %v1271 = vld [vmem:[#allocation13 + $0x48] sm:$0xff]
    %v1272 = vld [vmem:[#allocation13 + $0x50] sm:$0xff]
    %v1273 = vld [vmem:[#allocation13 + $0x58] sm:$0xff]
    %v1274 = vld [vmem:[#allocation14] sm:$0x1]
    %v1276 = vlaneseq
    %v1277 = vshrl.u32 %v1276, 7
    %v1278 = vsub.s32 0, %v1277
    %v1279 = vrot.slane %v1274, %v1278
    %v1282 = vsel %vm937, %v1261, 0
    %1284 = vmatprep.subr.mxu0 0.0
    %1285 = vmatpush1.msra.mxu0 0.0
    %1286 = vmatprep.subr.mxu0 0.0
    %1287 = vmatpush1.msra.mxu0 0.0
    %1288 = vmatprep.subr.mxu0 0.0
    %1289 = vmatpush1.msra.mxu0 0.0
    %1290 = vmatprep.subr.mxu0 0.0
    %1291 = vmatpush1.msra.mxu0 0.0
    %1292 = vmatprep.subr.mxu0 0.0
    %1293 = vmatpush1.msra.mxu0 %v1273
    %1294 = vmatprep.subr.mxu0 0.0
    %1295 = vmatpush1.msra.mxu0 %v1272
    %1296 = vmatprep.subr.mxu0 0.0
    %1297 = vmatpush1.msra.mxu0 %v1271
    %1298 = vmatprep.subr.mxu0 0.0
    %1299 = vmatpush1.msra.mxu0 %v1270
    %1300 = vmatprep.subr.mxu0 0.0
    %1301 = vmatpush1.msra.mxu0 %v1269
    %1302 = vmatprep.subr.mxu0 0.0
    %1303 = vmatpush1.msra.mxu0 %v1268
    %1304 = vmatprep.subr.mxu0 0.0
    %1305 = vmatpush1.msra.mxu0 %v1267
    %1306 = vmatprep.subr.mxu0 0.0
    %1307 = vmatpush1.msra.mxu0 %v1266
    %1308 = vmatprep.subr.mxu0 0.0
    %1309 = vmatpush1.msra.mxu0 %v1265
    %1310 = vmatprep.subr.mxu0 0.0
    %1311 = vmatpush1.msra.mxu0 %v1264
    %1312 = vmatprep.subr.mxu0 0.0
    %1313 = vmatpush1.msra.mxu0 %v1263
    %1314 = vmatprep.subr.mxu0 0.0
    %1315 = vmatpush1.msra.mxu0 %v1262
    %1316 = vmatprep.subr.mxu0 0.0
    %1317 = vmatpush2.msra.mxu0 0.0
    %1318 = vmatprep.subr.mxu0 0.0
    %1319 = vmatpush2.msra.mxu0 0.0
    %1320 = vmatprep.subr.mxu0 0.0
    %1321 = vmatpush2.msra.mxu0 0.0
    %1322 = vmatprep.subr.mxu0 0.0
    %1323 = vmatpush2.msra.mxu0 0.0
    %1324 = vmatprep.subr.mxu0 0.0
    %1325 = vmatpush2.msra.mxu0 0.0
    %1326 = vmatprep.subr.mxu0 0.0
    %1327 = vmatpush2.msra.mxu0 0.0
    %1328 = vmatprep.subr.mxu0 0.0
    %1329 = vmatpush2.msra.mxu0 0.0
    %1330 = vmatprep.subr.mxu0 0.0
    %1331 = vmatpush2.msra.mxu0 0.0
    %1332 = vmatprep.subr.mxu0 0.0
    %1333 = vmatpush2.msra.mxu0 0.0
    %1334 = vmatprep.subr.mxu0 0.0
    %1335 = vmatpush2.msra.mxu0 0.0
    %1336 = vmatprep.subr.mxu0 0.0
    %1337 = vmatpush2.msra.mxu0 0.0
    %1338 = vmatprep.subr.mxu0 0.0
    %1339 = vmatpush2.msra.mxu0 0.0
    %1340 = vmatprep.subr.mxu0 0.0
    %1341 = vmatpush2.msra.mxu0 0.0
    %1342 = vmatprep.subr.mxu0 0.0
    %1343 = vmatpush2.msra.mxu0 0.0
    %1344 = vmatprep.subr.mxu0 0.0
    %1345 = vmatpush2.msra.mxu0 0.0
    %1346 = vmatprep.subr.mxu0 0.0
    %1347 = vmatpush2.msra.mxu0 0.0
    %1348 = vmatprep.mubr.f32.mxu0 0.0
    %1349 = vmatmul.mubr.f32.gmra.mxu0 %v1282
    %v1350 = vpop.f32.mrf.mxu0
    %v1351 = vadd.f32 %v1279, %v1350
    %v1352 = vpop.f32.mrf.mxu0
    %1353 = vdwg.mxu0
    %1354 = vst [vmem:[#allocation16] sm:$0xff] %v1351
    // Predicated region
    $region78: #{tpu_custom_call.1} parent=1 // pred_check
      _
    $region79: #{tpu_custom_call.1} parent=1 // pred_check_branch
      %1356 = sbr.rel (0) target = $region81
    $region80: #{tpu_custom_call.1} parent=1 // pred_region
      %s1358 = ssub.s32 128, 128
      %1359 = vsyncadd [#allocation4], %s1358
      %s1361 = sshll.u32 [#allocation16], 4
      %s1362 = int_to_ptr.vmem [resolvable:$true] %s1361
      %1364 = dma.vmem_to_hbm [thread:$0]  %s1362, 128, %s11, [#allocation4]
    $region81: #{tpu_custom_call.1} parent=1 // pred_fallthru
      _
    // Predicated region
    $region82: #{tpu_custom_call.1} parent=1 // pred_check
      _
    $region83: #{tpu_custom_call.1} parent=1 // pred_check_branch
      %1366 = sbr.rel (0) target = $region85
    $region84: #{tpu_custom_call.1} parent=1 // pred_region
      %1367 = dma.done [#allocation4], 128
    $region85: #{tpu_custom_call.1} parent=1 // pred_fallthru
      _
    %1368 = vsyncpa [#allocation3], 1
    %1369 = vsyncpa [#allocation6], 1
    %1370 = vsyncpa [#allocation9], 1
    %1371 = vsyncpa [#allocation12], 1
    %1372 = vsyncpa [#allocation15], 1
    %1373 = vsyncpa [#allocation4], 1

</llo_original>
